<compile_context>
chip_gen: v7x
topology: tpu7x:2x2x1
jax: 0.10.0
libtpu: 0.0.40
codegen_flags: <defaults>
</compile_context>

<pallas_src>
import jax
import jax.numpy as jnp
from jax.experimental import pallas as pl
from jax.experimental.pallas import tpu as pltpu  # noqa: F401  (TPU-specific extensions)

# ---------------- model config (small, consistent with a BERT encoder) ------
B = 2        # batch
S = 8        # sequence length
H = 32       # hidden size
NH = 2       # attention heads
DH = H // NH
I = 64       # intermediate (FFN) size
VOCAB = 100
VPAD = 128   # vocab padded to one full lane tile for the one-hot embedding matmul
MAXPOS = 16
LN_EPS = 1e-12
COS_EPS = 1e-8        # torch.cosine_similarity default eps
PVEC = max(3 * H, I)  # padded lane width of the bias/LayerNorm param slab (=96)

# row layout of the packed parameter slab p_slab[20, PVEC]
_ROW_POS = 0              # rows 0..S-1 : positional embeddings
_ROW_TYPE = S             # row 8       : token-type-0 embedding
_ROW_G_EMB = S + 1        # 9
_ROW_B_EMB = S + 2        # 10
_ROW_B_QKV = S + 3        # 11
_ROW_B_O = S + 4          # 12
_ROW_G_ATT = S + 5        # 13
_ROW_B_ATT = S + 6        # 14
_ROW_B_I = S + 7          # 15
_ROW_B_F = S + 8          # 16
_ROW_G_FFN = S + 9        # 17
_ROW_B_FFN = S + 10       # 18
_ROW_B_P = S + 11         # 19
_NROWS = S + 12           # 20


def _layer_norm(x, gamma, beta):
    mu = jnp.mean(x, axis=-1, keepdims=True)
    xc = x - mu
    var = jnp.mean(xc * xc, axis=-1, keepdims=True)
    return xc * jax.lax.rsqrt(var + LN_EPS) * gamma + beta


# ---------------- the single fused Pallas kernel ------------------------------
def bert_sim_kernel(ids_ref, mask_ref, we_ref, wh_ref, wf_ref, p_ref, out_ref):
    # ids_ref:  [2B*S, 1]  int32  token ids, both sequences stacked
    # mask_ref: [2B, 1, S] f32    attention mask (1 = keep)
    # we_ref:   [VPAD, H]  f32    word-embedding table (vocab padded to 128)
    # wh_ref:   [H, 3H+H+I+H]     (Wqkv | Wo | Wi | Wpool) lane-concatenated
    # wf_ref:   [I, H]            FFN output weight
    # p_ref:    [20, PVEC]        pos/type embeddings, biases, LayerNorm params
    # out_ref:  [B, 128]          cosine similarity, lane-broadcast (lane-dense)
    f32 = jnp.float32
    N = 2 * B * S

    # ---- unpack packed parameter slabs (static slices) ----
    w_qkv = wh_ref[:, 0:3 * H]                  # [H, 3H]
    w_o   = wh_ref[:, 3 * H:4 * H]              # [H, H]
    w_i   = wh_ref[:, 4 * H:4 * H + I]          # [H, I]
    w_p   = wh_ref[:, 4 * H + I:5 * H + I]      # [H, H]
    w_f   = wf_ref[...]                         # [I, H]

    pos    = p_ref[_ROW_POS:_ROW_POS + S, 0:H]          # [S, H]
    type0  = p_ref[_ROW_TYPE:_ROW_TYPE + 1, 0:H]        # [1, H]
    g_emb  = p_ref[_ROW_G_EMB:_ROW_G_EMB + 1, 0:H]
    b_emb  = p_ref[_ROW_B_EMB:_ROW_B_EMB + 1, 0:H]
    b_qkv  = p_ref[_ROW_B_QKV:_ROW_B_QKV + 1, 0:3 * H]
    b_o    = p_ref[_ROW_B_O:_ROW_B_O + 1, 0:H]
    g_attn = p_ref[_ROW_G_ATT:_ROW_G_ATT + 1, 0:H]
    b_attn = p_ref[_ROW_B_ATT:_ROW_B_ATT + 1, 0:H]
    b_i    = p_ref[_ROW_B_I:_ROW_B_I + 1, 0:I]
    b_f    = p_ref[_ROW_B_F:_ROW_B_F + 1, 0:H]
    g_ffn  = p_ref[_ROW_G_FFN:_ROW_G_FFN + 1, 0:H]
    b_ffn  = p_ref[_ROW_B_FFN:_ROW_B_FFN + 1, 0:H]
    b_p    = p_ref[_ROW_B_P:_ROW_B_P + 1, 0:H]

    # ---- embeddings: word (one-hot selection matmul) + position + type ----
    lane_id = jax.lax.broadcasted_iota(jnp.int32, (N, VPAD), 1)      # [N, 128]
    onehot = (lane_id == ids_ref[...]).astype(f32)                   # [N, 128]
    we = jnp.dot(onehot, we_ref[...], preferred_element_type=f32)    # [N, H]
    x = we.reshape(2 * B, S, H) + pos[None, :, :] + type0[None, :, :]
    x = x.reshape(N, H)
    x = _layer_norm(x, g_emb, b_emb)                                 # embedding LN

    # additive attention bias (keys only)
    bias = (1.0 - mask_ref[...]) * -1e9                              # [2B, 1, S]

    # ---- fused QKV projection: one [2B*S,H] x [H,3H] matmul ----
    qkv = jnp.dot(x, w_qkv, preferred_element_type=f32) + b_qkv      # [N, 3H]
    q = qkv[:, 0:H].reshape(2 * B, S, H)
    k = qkv[:, H:2 * H].reshape(2 * B, S, H)
    v = qkv[:, 2 * H:3 * H].reshape(2 * B, S, H)

    # ---- multi-head self attention (heads statically unrolled, NH=2;
    #      each head's matmuls batched over all 2B sequences) ----
    scale = 1.0 / (float(DH) ** 0.5)
    attn_out = jnp.zeros((N, H), f32)
    for h in range(NH):
        sl = slice(h * DH, (h + 1) * DH)
        qh, kh, vh = q[:, :, sl], k[:, :, sl], v[:, :, sl]           # [2B, S, DH]
        s = jnp.einsum('bqd,bkd->bqk', qh, kh,
                       preferred_element_type=f32) * scale + bias    # [2B, S, S]
        s = s - jnp.max(s, axis=-1, keepdims=True)
        p = jnp.exp(s)
        p = p / jnp.sum(p, axis=-1, keepdims=True)
        ctx = jnp.einsum('bqk,bkd->bqd', p, vh,
                         preferred_element_type=f32)                 # [2B, S, DH]
        # fold this head through its slice of Wo (avoids lane-axis concat)
        attn_out = attn_out + jnp.dot(ctx.reshape(N, DH), w_o[sl, :],
                                      preferred_element_type=f32)
    attn_out = attn_out + b_o
    x = _layer_norm(x + attn_out, g_attn, b_attn)

    # ---- feed-forward ----
    h1 = jnp.dot(x, w_i, preferred_element_type=f32) + b_i
    h1 = jax.nn.gelu(h1)  # TODO(synk): exact erf-GELU of BERT (tanh approx used here)
    ffn = jnp.dot(h1, w_f, preferred_element_type=f32) + b_f
    x = _layer_norm(x + ffn, g_ffn, b_ffn)

    # ---- pooler: dense + tanh on the [CLS] row of each sequence.
    #      Gather CLS rows (row i*S) with a one-hot selection matmul. ----
    row_id = jax.lax.broadcasted_iota(jnp.int32, (2 * B, N), 1)
    cls_id = jax.lax.broadcasted_iota(jnp.int32, (2 * B, N), 0) * S
    sel = (row_id == cls_id).astype(f32)                             # [2B, 2B*S]
    cls = jnp.dot(sel, x, preferred_element_type=f32)                # [2B, H]
    pooled = jnp.tanh(jnp.dot(cls, w_p, preferred_element_type=f32) + b_p)
    # Dropout(p=0.1) is identity at inference (predict.py / eval mode).

    # ---- cosine similarity between the two pooled encodings ----
    p1 = pooled[0:B, :]          # sequence-1 poolings  [B, H]
    p2 = pooled[B:2 * B, :]      # sequence-2 poolings  [B, H]
    dot = jnp.sum(p1 * p2, axis=-1, keepdims=True)
    na = jnp.sqrt(jnp.sum(p1 * p1, axis=-1, keepdims=True))
    nb = jnp.sqrt(jnp.sum(p2 * p2, axis=-1, keepdims=True))
    sim = dot / (jnp.maximum(na, COS_EPS) * jnp.maximum(nb, COS_EPS))  # [B, 1]
    out_ref[...] = jnp.broadcast_to(sim, (B, 128))   # lane-dense store


# ---------------- deterministic parameter init --------------------------------
def init_params(key):
    keys = jax.random.split(key, 10)
    n = lambda k, shape: jax.random.normal(k, shape, jnp.float32) * 0.02
    zeros = lambda d: jnp.zeros((d,), jnp.float32)
    ones = lambda d: jnp.ones((d,), jnp.float32)

    word_emb = n(keys[0], (VOCAB, H))
    we_pad = jnp.zeros((VPAD, H), jnp.float32).at[:VOCAB].set(word_emb)
    pos_emb = n(keys[1], (MAXPOS, H))
    type_emb = n(keys[2], (2, H))

    wq, wk, wv = n(keys[3], (H, H)), n(keys[4], (H, H)), n(keys[5], (H, H))
    wo = n(keys[6], (H, H))
    wi = n(keys[7], (H, I))
    wf = n(keys[8], (I, H))
    wp = n(keys[9], (H, H))

    # packed weight slab: Wqkv | Wo | Wi | Wpool lane-concatenated
    w_qkv = jnp.concatenate([wq, wk, wv], axis=1)          # [H, 3H]
    w_h = jnp.concatenate([w_qkv, wo, wi, wp], axis=1)     # [H, 3H+H+I+H]

    def row(vec):  # pad a 1-D param vector to PVEC lanes, as one slab row
        return jnp.pad(vec, (0, PVEC - vec.shape[0]))[None, :]

    rows = [row(pos_emb[s]) for s in range(S)]              # rows 0..S-1
    rows.append(row(type_emb[0]))                           # row 8 (segment id 0)
    rows += [row(ones(H)), row(zeros(H))]                   # emb LN gamma / beta
    rows.append(row(zeros(3 * H)))                          # b_qkv
    rows.append(row(zeros(H)))                               # b_o
    rows += [row(ones(H)), row(zeros(H))]                   # attn LN gamma / beta
    rows.append(row(zeros(I)))                               # b_intermediate
    rows.append(row(zeros(H)))                               # b_ffn_out
    rows += [row(ones(H)), row(zeros(H))]                   # ffn LN gamma / beta
    rows.append(row(zeros(H)))                               # pooler bias
    p_slab = jnp.concatenate(rows, axis=0)                  # [20, PVEC]
    assert p_slab.shape == (_NROWS, PVEC)

    return we_pad, w_h, wf, p_slab


def bert_similarity_forward(input_ids1, attention_mask1,
                            input_ids2, attention_mask2, params):
    we_pad, w_h, w_f, p_slab = params
    ids = jnp.concatenate([input_ids1, input_ids2], axis=0)           # [2B, S]
    ids = ids.astype(jnp.int32).reshape(2 * B * S, 1)                 # [2B*S, 1]
    mask = jnp.concatenate([attention_mask1, attention_mask2], axis=0)
    mask = mask.astype(jnp.float32).reshape(2 * B, 1, S)              # [2B, 1, S]

    out = pl.pallas_call(
        bert_sim_kernel,
        out_shape=jax.ShapeDtypeStruct((B, 128), jnp.float32),
    )(ids, mask, we_pad, w_h, w_f, p_slab)                            # one launch
    return out[:, 0]                                                  # [B]


if __name__ == "__main__":
    key = jax.random.PRNGKey(0)
    kp, k1, k2 = jax.random.split(key, 3)
    params = init_params(kp)

    input_ids1 = jax.random.randint(k1, (B, S), 0, VOCAB, dtype=jnp.int32)
    input_ids2 = jax.random.randint(k2, (B, S), 0, VOCAB, dtype=jnp.int32)
    attention_mask1 = jnp.ones((B, S), jnp.int32)
    attention_mask2 = jnp.ones((B, S), jnp.int32).at[1, 6:].set(0)  # some padding

    sim = jax.jit(bert_similarity_forward)(
        input_ids1, attention_mask1, input_ids2, attention_mask2, params)
    sim = jax.block_until_ready(sim)
    assert sim.shape == (B,)
    assert bool(jnp.all(jnp.isfinite(sim)))
    assert bool(jnp.all(jnp.abs(sim) <= 1.0 + 1e-5))
    print("KERNEL_OK")
</pallas_src>

<mosaic_0001>
module attributes {stable_mosaic.version = 11 : i64} {
  func.func @bert_sim_kernel(%arg0: memref<32x1xi32, #tpu.memory_space<vmem>>, %arg1: memref<4x1x8xf32, #tpu.memory_space<vmem>>, %arg2: memref<128x32xf32, #tpu.memory_space<vmem>>, %arg3: memref<32x224xf32, #tpu.memory_space<vmem>>, %arg4: memref<64x32xf32, #tpu.memory_space<vmem>>, %arg5: memref<20x96xf32, #tpu.memory_space<vmem>>, %arg6: memref<2x128xf32, #tpu.memory_space<vmem>>) attributes {dimension_semantics = [], scalar_prefetch = 0 : i64, scratch_operands = 0 : i64, tpu.core_type = #tpu.core_type<tc>} {
    %c0 = arith.constant 0 : index
    %c0_0 = arith.constant 0 : index
    %0 = vector.load %arg3[%c0, %c0_0] : memref<32x224xf32, #tpu.memory_space<vmem>>, vector<32x96xf32>
    %c0_1 = arith.constant 0 : index
    %c96 = arith.constant 96 : index
    %1 = vector.load %arg3[%c0_1, %c96] : memref<32x224xf32, #tpu.memory_space<vmem>>, vector<32x32xf32>
    %c0_2 = arith.constant 0 : index
    %c128 = arith.constant 128 : index
    %2 = vector.load %arg3[%c0_2, %c128] : memref<32x224xf32, #tpu.memory_space<vmem>>, vector<32x64xf32>
    %c0_3 = arith.constant 0 : index
    %c192 = arith.constant 192 : index
    %3 = vector.load %arg3[%c0_3, %c192] : memref<32x224xf32, #tpu.memory_space<vmem>>, vector<32x32xf32>
    %c0_4 = arith.constant 0 : index
    %c0_5 = arith.constant 0 : index
    %4 = vector.load %arg4[%c0_4, %c0_5] : memref<64x32xf32, #tpu.memory_space<vmem>>, vector<64x32xf32>
    %c0_6 = arith.constant 0 : index
    %c0_7 = arith.constant 0 : index
    %5 = vector.load %arg5[%c0_6, %c0_7] : memref<20x96xf32, #tpu.memory_space<vmem>>, vector<8x32xf32>
    %c8 = arith.constant 8 : index
    %c0_8 = arith.constant 0 : index
    %6 = vector.load %arg5[%c8, %c0_8] : memref<20x96xf32, #tpu.memory_space<vmem>>, vector<1x32xf32>
    %c9 = arith.constant 9 : index
    %c0_9 = arith.constant 0 : index
    %7 = vector.load %arg5[%c9, %c0_9] : memref<20x96xf32, #tpu.memory_space<vmem>>, vector<1x32xf32>
    %c10 = arith.constant 10 : index
    %c0_10 = arith.constant 0 : index
    %8 = vector.load %arg5[%c10, %c0_10] : memref<20x96xf32, #tpu.memory_space<vmem>>, vector<1x32xf32>
    %c11 = arith.constant 11 : index
    %c0_11 = arith.constant 0 : index
    %9 = vector.load %arg5[%c11, %c0_11] : memref<20x96xf32, #tpu.memory_space<vmem>>, vector<1x96xf32>
    %c12 = arith.constant 12 : index
    %c0_12 = arith.constant 0 : index
    %10 = vector.load %arg5[%c12, %c0_12] : memref<20x96xf32, #tpu.memory_space<vmem>>, vector<1x32xf32>
    %c13 = arith.constant 13 : index
    %c0_13 = arith.constant 0 : index
    %11 = vector.load %arg5[%c13, %c0_13] : memref<20x96xf32, #tpu.memory_space<vmem>>, vector<1x32xf32>
    %c14 = arith.constant 14 : index
    %c0_14 = arith.constant 0 : index
    %12 = vector.load %arg5[%c14, %c0_14] : memref<20x96xf32, #tpu.memory_space<vmem>>, vector<1x32xf32>
    %c15 = arith.constant 15 : index
    %c0_15 = arith.constant 0 : index
    %13 = vector.load %arg5[%c15, %c0_15] : memref<20x96xf32, #tpu.memory_space<vmem>>, vector<1x64xf32>
    %c16 = arith.constant 16 : index
    %c0_16 = arith.constant 0 : index
    %14 = vector.load %arg5[%c16, %c0_16] : memref<20x96xf32, #tpu.memory_space<vmem>>, vector<1x32xf32>
    %c17 = arith.constant 17 : index
    %c0_17 = arith.constant 0 : index
    %15 = vector.load %arg5[%c17, %c0_17] : memref<20x96xf32, #tpu.memory_space<vmem>>, vector<1x32xf32>
    %c18 = arith.constant 18 : index
    %c0_18 = arith.constant 0 : index
    %16 = vector.load %arg5[%c18, %c0_18] : memref<20x96xf32, #tpu.memory_space<vmem>>, vector<1x32xf32>
    %c19 = arith.constant 19 : index
    %c0_19 = arith.constant 0 : index
    %17 = vector.load %arg5[%c19, %c0_19] : memref<20x96xf32, #tpu.memory_space<vmem>>, vector<1x32xf32>
    %18 = tpu.iota {dimensions = array<i32: 1>} : vector<32x128xi32>
    %c0_20 = arith.constant 0 : index
    %c0_21 = arith.constant 0 : index
    %19 = vector.load %arg0[%c0_20, %c0_21] : memref<32x1xi32, #tpu.memory_space<vmem>>, vector<32x1xi32>
    %20 = vector.broadcast %19 : vector<32x1xi32> to vector<32x128xi32>
    %21 = arith.cmpi eq, %18, %20 : vector<32x128xi32>
    %22 = arith.extui %21 : vector<32x128xi1> to vector<32x128xi32>
    %23 = arith.sitofp %22 : vector<32x128xi32> to vector<32x128xf32>
    %c0_22 = arith.constant 0 : index
    %c0_23 = arith.constant 0 : index
    %24 = vector.load %arg2[%c0_22, %c0_23] : memref<128x32xf32, #tpu.memory_space<vmem>>, vector<128x32xf32>
    %cst = arith.constant dense<0.000000e+00> : vector<32x32xf32>
    %25 = tpu.matmul %23, %24, %cst {dimension_numbers = #tpu.dot_dimension_numbers<[1], [0], [0], [1], [0, 0, 1, 1], [], []>} : vector<32x128xf32>, vector<128x32xf32>, vector<32x32xf32> -> vector<32x32xf32>
    %26 = vector.shape_cast %25 : vector<32x32xf32> to vector<4x8x32xf32>
    %27 = vector.shape_cast %5 : vector<8x32xf32> to vector<1x8x32xf32>
    %28 = vector.broadcast %27 : vector<1x8x32xf32> to vector<4x8x32xf32>
    %29 = arith.addf %26, %28 : vector<4x8x32xf32>
    %30 = vector.shape_cast %6 : vector<1x32xf32> to vector<1x1x32xf32>
    %31 = vector.broadcast %30 : vector<1x1x32xf32> to vector<4x8x32xf32>
    %32 = arith.addf %29, %31 : vector<4x8x32xf32>
    %33 = vector.shape_cast %32 : vector<4x8x32xf32> to vector<32x32xf32>
    %cst_24 = arith.constant dense<0.000000e+00> : vector<32xf32>
    %34 = vector.multi_reduction <add>, %33, %cst_24 [1] : vector<32x32xf32> to vector<32xf32>
    %35 = vector.shape_cast %34 : vector<32xf32> to vector<32x1xf32>
    %cst_25 = arith.constant 3.200000e+01 : f32
    %36 = vector.broadcast %cst_25 : f32 to vector<32x1xf32>
    %37 = arith.divf %35, %36 : vector<32x1xf32>
    %38 = vector.broadcast %37 : vector<32x1xf32> to vector<32x32xf32>
    %39 = arith.subf %33, %38 : vector<32x32xf32>
    %40 = arith.mulf %39, %39 : vector<32x32xf32>
    %cst_26 = arith.constant dense<0.000000e+00> : vector<32xf32>
    %41 = vector.multi_reduction <add>, %40, %cst_26 [1] : vector<32x32xf32> to vector<32xf32>
    %42 = vector.shape_cast %41 : vector<32xf32> to vector<32x1xf32>
    %cst_27 = arith.constant 3.200000e+01 : f32
    %43 = vector.broadcast %cst_27 : f32 to vector<32x1xf32>
    %44 = arith.divf %42, %43 : vector<32x1xf32>
    %cst_28 = arith.constant 9.99999996E-13 : f32
    %45 = vector.broadcast %cst_28 : f32 to vector<32x1xf32>
    %46 = arith.addf %44, %45 : vector<32x1xf32>
    %47 = math.rsqrt %46 : vector<32x1xf32>
    %48 = vector.broadcast %47 : vector<32x1xf32> to vector<32x32xf32>
    %49 = arith.mulf %39, %48 : vector<32x32xf32>
    %50 = vector.broadcast %7 : vector<1x32xf32> to vector<32x32xf32>
    %51 = arith.mulf %49, %50 : vector<32x32xf32>
    %52 = vector.broadcast %8 : vector<1x32xf32> to vector<32x32xf32>
    %53 = arith.addf %51, %52 : vector<32x32xf32>
    %c0_29 = arith.constant 0 : index
    %c0_30 = arith.constant 0 : index
    %c0_31 = arith.constant 0 : index
    %54 = vector.load %arg1[%c0_29, %c0_30, %c0_31] : memref<4x1x8xf32, #tpu.memory_space<vmem>>, vector<4x1x8xf32>
    %cst_32 = arith.constant 1.000000e+00 : f32
    %55 = vector.broadcast %cst_32 : f32 to vector<4x1x8xf32>
    %56 = arith.subf %55, %54 : vector<4x1x8xf32>
    %cst_33 = arith.constant -1.000000e+09 : f32
    %57 = vector.broadcast %cst_33 : f32 to vector<4x1x8xf32>
    %58 = arith.mulf %56, %57 : vector<4x1x8xf32>
    %cst_34 = arith.constant dense<0.000000e+00> : vector<32x96xf32>
    %59 = tpu.matmul %53, %0, %cst_34 {dimension_numbers = #tpu.dot_dimension_numbers<[1], [0], [0], [1], [0, 0, 1, 1], [], []>} : vector<32x32xf32>, vector<32x96xf32>, vector<32x96xf32> -> vector<32x96xf32>
    %60 = vector.broadcast %9 : vector<1x96xf32> to vector<32x96xf32>
    %61 = arith.addf %59, %60 : vector<32x96xf32>
    %62 = vector.extract_strided_slice %61 {offsets = [0, 0], sizes = [32, 32], strides = [1, 1]} : vector<32x96xf32> to vector<32x32xf32>
    %63 = vector.shape_cast %62 : vector<32x32xf32> to vector<4x8x32xf32>
    %64 = vector.extract_strided_slice %61 {offsets = [0, 32], sizes = [32, 32], strides = [1, 1]} : vector<32x96xf32> to vector<32x32xf32>
    %65 = vector.shape_cast %64 : vector<32x32xf32> to vector<4x8x32xf32>
    %66 = vector.extract_strided_slice %61 {offsets = [0, 64], sizes = [32, 32], strides = [1, 1]} : vector<32x96xf32> to vector<32x32xf32>
    %67 = vector.shape_cast %66 : vector<32x32xf32> to vector<4x8x32xf32>
    %cst_35 = arith.constant 0.000000e+00 : f32
    %68 = vector.broadcast %cst_35 : f32 to vector<32x32xf32>
    %69 = vector.extract_strided_slice %63 {offsets = [0, 0, 0], sizes = [4, 8, 16], strides = [1, 1, 1]} : vector<4x8x32xf32> to vector<4x8x16xf32>
    %70 = vector.extract_strided_slice %65 {offsets = [0, 0, 0], sizes = [4, 8, 16], strides = [1, 1, 1]} : vector<4x8x32xf32> to vector<4x8x16xf32>
    %71 = vector.extract_strided_slice %67 {offsets = [0, 0, 0], sizes = [4, 8, 16], strides = [1, 1, 1]} : vector<4x8x32xf32> to vector<4x8x16xf32>
    "tpu.trace_start"() <{level = 10 : i32, message = "bqd,bkd->bqk"}> : () -> ()
    %cst_36 = arith.constant dense<0.000000e+00> : vector<4x8x8xf32>
    %72 = tpu.matmul %69, %70, %cst_36 {dimension_numbers = #tpu.dot_dimension_numbers<[2], [2], [1], [1], [0, 0, 0, 1, 1, 1], [0], [0]>} : vector<4x8x16xf32>, vector<4x8x16xf32>, vector<4x8x8xf32> -> vector<4x8x8xf32>
    "tpu.trace_stop"() : () -> ()
    %cst_37 = arith.constant 2.500000e-01 : f32
    %73 = vector.broadcast %cst_37 : f32 to vector<4x8x8xf32>
    %74 = arith.mulf %72, %73 : vector<4x8x8xf32>
    %75 = vector.broadcast %58 : vector<4x1x8xf32> to vector<4x8x8xf32>
    %76 = arith.addf %74, %75 : vector<4x8x8xf32>
    %cst_38 = arith.constant dense<0xFF800000> : vector<4x8xf32>
    %77 = vector.multi_reduction <maximumf>, %76, %cst_38 [2] : vector<4x8x8xf32> to vector<4x8xf32>
    %78 = vector.shape_cast %77 : vector<4x8xf32> to vector<4x8x1xf32>
    %79 = vector.broadcast %78 : vector<4x8x1xf32> to vector<4x8x8xf32>
    %80 = arith.subf %76, %79 : vector<4x8x8xf32>
    %81 = math.exp %80 : vector<4x8x8xf32>
    %cst_39 = arith.constant dense<0.000000e+00> : vector<4x8xf32>
    %82 = vector.multi_reduction <add>, %81, %cst_39 [2] : vector<4x8x8xf32> to vector<4x8xf32>
    %83 = vector.shape_cast %82 : vector<4x8xf32> to vector<4x8x1xf32>
    %84 = vector.broadcast %83 : vector<4x8x1xf32> to vector<4x8x8xf32>
    %85 = arith.divf %81, %84 : vector<4x8x8xf32>
    "tpu.trace_start"() <{level = 10 : i32, message = "bqk,bkd->bqd"}> : () -> ()
    %cst_40 = arith.constant dense<0.000000e+00> : vector<4x8x16xf32>
    %86 = tpu.matmul %85, %71, %cst_40 {dimension_numbers = #tpu.dot_dimension_numbers<[2], [1], [1], [2], [0, 0, 0, 1, 1, 2], [0], [0]>} : vector<4x8x8xf32>, vector<4x8x16xf32>, vector<4x8x16xf32> -> vector<4x8x16xf32>
    "tpu.trace_stop"() : () -> ()
    %87 = vector.shape_cast %86 : vector<4x8x16xf32> to vector<32x16xf32>
    %88 = vector.extract_strided_slice %1 {offsets = [0, 0], sizes = [16, 32], strides = [1, 1]} : vector<32x32xf32> to vector<16x32xf32>
    %cst_41 = arith.constant dense<0.000000e+00> : vector<32x32xf32>
    %89 = tpu.matmul %87, %88, %cst_41 {dimension_numbers = #tpu.dot_dimension_numbers<[1], [0], [0], [1], [0, 0, 1, 1], [], []>} : vector<32x16xf32>, vector<16x32xf32>, vector<32x32xf32> -> vector<32x32xf32>
    %90 = arith.addf %68, %89 : vector<32x32xf32>
    %91 = vector.extract_strided_slice %63 {offsets = [0, 0, 16], sizes = [4, 8, 16], strides = [1, 1, 1]} : vector<4x8x32xf32> to vector<4x8x16xf32>
    %92 = vector.extract_strided_slice %65 {offsets = [0, 0, 16], sizes = [4, 8, 16], strides = [1, 1, 1]} : vector<4x8x32xf32> to vector<4x8x16xf32>
    %93 = vector.extract_strided_slice %67 {offsets = [0, 0, 16], sizes = [4, 8, 16], strides = [1, 1, 1]} : vector<4x8x32xf32> to vector<4x8x16xf32>
    "tpu.trace_start"() <{level = 10 : i32, message = "bqd,bkd->bqk"}> : () -> ()
    %cst_42 = arith.constant dense<0.000000e+00> : vector<4x8x8xf32>
    %94 = tpu.matmul %91, %92, %cst_42 {dimension_numbers = #tpu.dot_dimension_numbers<[2], [2], [1], [1], [0, 0, 0, 1, 1, 1], [0], [0]>} : vector<4x8x16xf32>, vector<4x8x16xf32>, vector<4x8x8xf32> -> vector<4x8x8xf32>
    "tpu.trace_stop"() : () -> ()
    %cst_43 = arith.constant 2.500000e-01 : f32
    %95 = vector.broadcast %cst_43 : f32 to vector<4x8x8xf32>
    %96 = arith.mulf %94, %95 : vector<4x8x8xf32>
    %97 = vector.broadcast %58 : vector<4x1x8xf32> to vector<4x8x8xf32>
    %98 = arith.addf %96, %97 : vector<4x8x8xf32>
    %cst_44 = arith.constant dense<0xFF800000> : vector<4x8xf32>
    %99 = vector.multi_reduction <maximumf>, %98, %cst_44 [2] : vector<4x8x8xf32> to vector<4x8xf32>
    %100 = vector.shape_cast %99 : vector<4x8xf32> to vector<4x8x1xf32>
    %101 = vector.broadcast %100 : vector<4x8x1xf32> to vector<4x8x8xf32>
    %102 = arith.subf %98, %101 : vector<4x8x8xf32>
    %103 = math.exp %102 : vector<4x8x8xf32>
    %cst_45 = arith.constant dense<0.000000e+00> : vector<4x8xf32>
    %104 = vector.multi_reduction <add>, %103, %cst_45 [2] : vector<4x8x8xf32> to vector<4x8xf32>
    %105 = vector.shape_cast %104 : vector<4x8xf32> to vector<4x8x1xf32>
    %106 = vector.broadcast %105 : vector<4x8x1xf32> to vector<4x8x8xf32>
    %107 = arith.divf %103, %106 : vector<4x8x8xf32>
    "tpu.trace_start"() <{level = 10 : i32, message = "bqk,bkd->bqd"}> : () -> ()
    %cst_46 = arith.constant dense<0.000000e+00> : vector<4x8x16xf32>
    %108 = tpu.matmul %107, %93, %cst_46 {dimension_numbers = #tpu.dot_dimension_numbers<[2], [1], [1], [2], [0, 0, 0, 1, 1, 2], [0], [0]>} : vector<4x8x8xf32>, vector<4x8x16xf32>, vector<4x8x16xf32> -> vector<4x8x16xf32>
    "tpu.trace_stop"() : () -> ()
    %109 = vector.shape_cast %108 : vector<4x8x16xf32> to vector<32x16xf32>
    %110 = vector.extract_strided_slice %1 {offsets = [16, 0], sizes = [16, 32], strides = [1, 1]} : vector<32x32xf32> to vector<16x32xf32>
    %cst_47 = arith.constant dense<0.000000e+00> : vector<32x32xf32>
    %111 = tpu.matmul %109, %110, %cst_47 {dimension_numbers = #tpu.dot_dimension_numbers<[1], [0], [0], [1], [0, 0, 1, 1], [], []>} : vector<32x16xf32>, vector<16x32xf32>, vector<32x32xf32> -> vector<32x32xf32>
    %112 = arith.addf %90, %111 : vector<32x32xf32>
    %113 = vector.broadcast %10 : vector<1x32xf32> to vector<32x32xf32>
    %114 = arith.addf %112, %113 : vector<32x32xf32>
    %115 = arith.addf %53, %114 : vector<32x32xf32>
    %cst_48 = arith.constant dense<0.000000e+00> : vector<32xf32>
    %116 = vector.multi_reduction <add>, %115, %cst_48 [1] : vector<32x32xf32> to vector<32xf32>
    %117 = vector.shape_cast %116 : vector<32xf32> to vector<32x1xf32>
    %cst_49 = arith.constant 3.200000e+01 : f32
    %118 = vector.broadcast %cst_49 : f32 to vector<32x1xf32>
    %119 = arith.divf %117, %118 : vector<32x1xf32>
    %120 = vector.broadcast %119 : vector<32x1xf32> to vector<32x32xf32>
    %121 = arith.subf %115, %120 : vector<32x32xf32>
    %122 = arith.mulf %121, %121 : vector<32x32xf32>
    %cst_50 = arith.constant dense<0.000000e+00> : vector<32xf32>
    %123 = vector.multi_reduction <add>, %122, %cst_50 [1] : vector<32x32xf32> to vector<32xf32>
    %124 = vector.shape_cast %123 : vector<32xf32> to vector<32x1xf32>
    %cst_51 = arith.constant 3.200000e+01 : f32
    %125 = vector.broadcast %cst_51 : f32 to vector<32x1xf32>
    %126 = arith.divf %124, %125 : vector<32x1xf32>
    %cst_52 = arith.constant 9.99999996E-13 : f32
    %127 = vector.broadcast %cst_52 : f32 to vector<32x1xf32>
    %128 = arith.addf %126, %127 : vector<32x1xf32>
    %129 = math.rsqrt %128 : vector<32x1xf32>
    %130 = vector.broadcast %129 : vector<32x1xf32> to vector<32x32xf32>
    %131 = arith.mulf %121, %130 : vector<32x32xf32>
    %132 = vector.broadcast %11 : vector<1x32xf32> to vector<32x32xf32>
    %133 = arith.mulf %131, %132 : vector<32x32xf32>
    %134 = vector.broadcast %12 : vector<1x32xf32> to vector<32x32xf32>
    %135 = arith.addf %133, %134 : vector<32x32xf32>
    %cst_53 = arith.constant dense<0.000000e+00> : vector<32x64xf32>
    %136 = tpu.matmul %135, %2, %cst_53 {dimension_numbers = #tpu.dot_dimension_numbers<[1], [0], [0], [1], [0, 0, 1, 1], [], []>} : vector<32x32xf32>, vector<32x64xf32>, vector<32x64xf32> -> vector<32x64xf32>
    %137 = vector.broadcast %13 : vector<1x64xf32> to vector<32x64xf32>
    %138 = arith.addf %136, %137 : vector<32x64xf32>
    %139 = arith.mulf %138, %138 : vector<32x64xf32>
    %140 = arith.mulf %138, %139 : vector<32x64xf32>
    %cst_54 = arith.constant 4.471500e-02 : f32
    %141 = vector.broadcast %cst_54 : f32 to vector<32x64xf32>
    %142 = arith.mulf %141, %140 : vector<32x64xf32>
    %143 = arith.addf %138, %142 : vector<32x64xf32>
    %cst_55 = arith.constant 0.797884583 : f32
    %144 = vector.broadcast %cst_55 : f32 to vector<32x64xf32>
    %145 = arith.mulf %144, %143 : vector<32x64xf32>
    %146 = math.tanh %145 : vector<32x64xf32>
    %cst_56 = arith.constant 1.000000e+00 : f32
    %147 = vector.broadcast %cst_56 : f32 to vector<32x64xf32>
    %148 = arith.addf %147, %146 : vector<32x64xf32>
    %cst_57 = arith.constant 5.000000e-01 : f32
    %149 = vector.broadcast %cst_57 : f32 to vector<32x64xf32>
    %150 = arith.mulf %149, %148 : vector<32x64xf32>
    %151 = arith.mulf %138, %150 : vector<32x64xf32>
    %cst_58 = arith.constant dense<0.000000e+00> : vector<32x32xf32>
    %152 = tpu.matmul %151, %4, %cst_58 {dimension_numbers = #tpu.dot_dimension_numbers<[1], [0], [0], [1], [0, 0, 1, 1], [], []>} : vector<32x64xf32>, vector<64x32xf32>, vector<32x32xf32> -> vector<32x32xf32>
    %153 = vector.broadcast %14 : vector<1x32xf32> to vector<32x32xf32>
    %154 = arith.addf %152, %153 : vector<32x32xf32>
    %155 = arith.addf %135, %154 : vector<32x32xf32>
    %cst_59 = arith.constant dense<0.000000e+00> : vector<32xf32>
    %156 = vector.multi_reduction <add>, %155, %cst_59 [1] : vector<32x32xf32> to vector<32xf32>
    %157 = vector.shape_cast %156 : vector<32xf32> to vector<32x1xf32>
    %cst_60 = arith.constant 3.200000e+01 : f32
    %158 = vector.broadcast %cst_60 : f32 to vector<32x1xf32>
    %159 = arith.divf %157, %158 : vector<32x1xf32>
    %160 = vector.broadcast %159 : vector<32x1xf32> to vector<32x32xf32>
    %161 = arith.subf %155, %160 : vector<32x32xf32>
    %162 = arith.mulf %161, %161 : vector<32x32xf32>
    %cst_61 = arith.constant dense<0.000000e+00> : vector<32xf32>
    %163 = vector.multi_reduction <add>, %162, %cst_61 [1] : vector<32x32xf32> to vector<32xf32>
    %164 = vector.shape_cast %163 : vector<32xf32> to vector<32x1xf32>
    %cst_62 = arith.constant 3.200000e+01 : f32
    %165 = vector.broadcast %cst_62 : f32 to vector<32x1xf32>
    %166 = arith.divf %164, %165 : vector<32x1xf32>
    %cst_63 = arith.constant 9.99999996E-13 : f32
    %167 = vector.broadcast %cst_63 : f32 to vector<32x1xf32>
    %168 = arith.addf %166, %167 : vector<32x1xf32>
    %169 = math.rsqrt %168 : vector<32x1xf32>
    %170 = vector.broadcast %169 : vector<32x1xf32> to vector<32x32xf32>
    %171 = arith.mulf %161, %170 : vector<32x32xf32>
    %172 = vector.broadcast %15 : vector<1x32xf32> to vector<32x32xf32>
    %173 = arith.mulf %171, %172 : vector<32x32xf32>
    %174 = vector.broadcast %16 : vector<1x32xf32> to vector<32x32xf32>
    %175 = arith.addf %173, %174 : vector<32x32xf32>
    %176 = tpu.iota {dimensions = array<i32: 1>} : vector<4x32xi32>
    %177 = tpu.iota {dimensions = array<i32: 0>} : vector<4x32xi32>
    %c8_i32 = arith.constant 8 : i32
    %178 = vector.broadcast %c8_i32 : i32 to vector<4x32xi32>
    %179 = arith.muli %177, %178 : vector<4x32xi32>
    %180 = arith.cmpi eq, %176, %179 : vector<4x32xi32>
    %181 = arith.extui %180 : vector<4x32xi1> to vector<4x32xi32>
    %182 = arith.sitofp %181 : vector<4x32xi32> to vector<4x32xf32>
    %cst_64 = arith.constant dense<0.000000e+00> : vector<4x32xf32>
    %183 = tpu.matmul %182, %175, %cst_64 {dimension_numbers = #tpu.dot_dimension_numbers<[1], [0], [0], [1], [0, 0, 1, 1], [], []>} : vector<4x32xf32>, vector<32x32xf32>, vector<4x32xf32> -> vector<4x32xf32>
    %cst_65 = arith.constant dense<0.000000e+00> : vector<4x32xf32>
    %184 = tpu.matmul %183, %3, %cst_65 {dimension_numbers = #tpu.dot_dimension_numbers<[1], [0], [0], [1], [0, 0, 1, 1], [], []>} : vector<4x32xf32>, vector<32x32xf32>, vector<4x32xf32> -> vector<4x32xf32>
    %185 = vector.broadcast %17 : vector<1x32xf32> to vector<4x32xf32>
    %186 = arith.addf %184, %185 : vector<4x32xf32>
    %187 = math.tanh %186 : vector<4x32xf32>
    %188 = vector.extract_strided_slice %187 {offsets = [0, 0], sizes = [2, 32], strides = [1, 1]} : vector<4x32xf32> to vector<2x32xf32>
    %189 = vector.extract_strided_slice %187 {offsets = [2, 0], sizes = [2, 32], strides = [1, 1]} : vector<4x32xf32> to vector<2x32xf32>
    %190 = arith.mulf %188, %189 : vector<2x32xf32>
    %cst_66 = arith.constant dense<0.000000e+00> : vector<2xf32>
    %191 = vector.multi_reduction <add>, %190, %cst_66 [1] : vector<2x32xf32> to vector<2xf32>
    %192 = vector.shape_cast %191 : vector<2xf32> to vector<2x1xf32>
    %193 = arith.mulf %188, %188 : vector<2x32xf32>
    %cst_67 = arith.constant dense<0.000000e+00> : vector<2xf32>
    %194 = vector.multi_reduction <add>, %193, %cst_67 [1] : vector<2x32xf32> to vector<2xf32>
    %195 = vector.shape_cast %194 : vector<2xf32> to vector<2x1xf32>
    %196 = math.sqrt %195 : vector<2x1xf32>
    %197 = arith.mulf %189, %189 : vector<2x32xf32>
    %cst_68 = arith.constant dense<0.000000e+00> : vector<2xf32>
    %198 = vector.multi_reduction <add>, %197, %cst_68 [1] : vector<2x32xf32> to vector<2xf32>
    %199 = vector.shape_cast %198 : vector<2xf32> to vector<2x1xf32>
    %200 = math.sqrt %199 : vector<2x1xf32>
    %cst_69 = arith.constant 9.99999993E-9 : f32
    %201 = vector.broadcast %cst_69 : f32 to vector<2x1xf32>
    %202 = arith.maximumf %196, %201 : vector<2x1xf32>
    %cst_70 = arith.constant 9.99999993E-9 : f32
    %203 = vector.broadcast %cst_70 : f32 to vector<2x1xf32>
    %204 = arith.maximumf %200, %203 : vector<2x1xf32>
    %205 = arith.mulf %202, %204 : vector<2x1xf32>
    %206 = arith.divf %192, %205 : vector<2x1xf32>
    %207 = vector.shape_cast %206 : vector<2x1xf32> to vector<2x1xf32>
    %208 = vector.broadcast %207 : vector<2x1xf32> to vector<2x128xf32>
    %c0_71 = arith.constant 0 : index
    %c0_72 = arith.constant 0 : index
    %209 = vector.load %arg6[%c0_71, %c0_72] : memref<2x128xf32, #tpu.memory_space<vmem>>, vector<2x128xf32>
    tpu.vector_store %arg6[%c0_71, %c0_72], %208 {strides = array<i32>} : memref<2x128xf32, #tpu.memory_space<vmem>>, vector<2x128xf32>,
    return
  }
}

</mosaic_0001>

<llo_original>
// kernel: bert_similarity_forward.1
$region0: #{bert_similarity_forward.1}
  #allocation0 [shape = 'u32[]', space=smem, size = 0x4, offset = 0x4, fixed_abs, tag = 'smem constant byte address 0x4 - core index']
  #allocation1 [shape = 'u32[144,128]{1,0:T(1,128)}', space=vmem, size = 0x12000, scoped, tag = 'internal scratch']
  %s0 = inlined_call_operand.vmem [shape: s32[32,1], index: 0, kind: input, shape index: {}]
  %s1 = inlined_call_operand.vmem [shape: f32[4,1,8], index: 1, kind: input, shape index: {}]
  %s2 = inlined_call_operand.vmem [shape: f32[128,32], index: 2, kind: input, shape index: {}]
  %s3 = inlined_call_operand.vmem [shape: f32[32,224], index: 3, kind: input, shape index: {}]
  %s4 = inlined_call_operand.vmem [shape: f32[64,32], index: 4, kind: input, shape index: {}]
  %s5 = inlined_call_operand.vmem [shape: f32[20,96], index: 5, kind: input, shape index: {}]
  %s6 = inlined_call_operand.vmem [shape: f32[2,128], index: 6, kind: output, shape index: {}]
  %s7 = sld [smem:[#allocation0]]
  $region34: #{bert_similarity_forward.1} parent=0
    _
  %s9 = ssub.s32 1, %s7
  %s10 = scalar_select 0, %s9, %s7
  // Predicated region
  $region2: #{bert_similarity_forward.1} parent=0 // pred_check
    _
  $region3: #{bert_similarity_forward.1} parent=0 // pred_check_branch
    %12 = sbr.rel (0) target = $region5
  $region4: #{bert_similarity_forward.1} parent=0 // pred_region
    _
  $region5: #{bert_similarity_forward.1} parent=0 // pred_fallthru
    _
  // Predicated region
  $region6: #{bert_similarity_forward.1} parent=0 // pred_check
    _
  $region7: #{bert_similarity_forward.1} parent=0 // pred_check_branch
    %14 = sbr.rel (0) target = $region9
  $region8: #{bert_similarity_forward.1} parent=0 // pred_region
    _
  $region9: #{bert_similarity_forward.1} parent=0 // pred_fallthru
    _
  // Predicated region
  $region10: #{bert_similarity_forward.1} parent=0 // pred_check
    _
  $region11: #{bert_similarity_forward.1} parent=0 // pred_check_branch
    %16 = sbr.rel (0) target = $region13
  $region12: #{bert_similarity_forward.1} parent=0 // pred_region
    _
  $region13: #{bert_similarity_forward.1} parent=0 // pred_fallthru
    _
  // Predicated region
  $region14: #{bert_similarity_forward.1} parent=0 // pred_check
    _
  $region15: #{bert_similarity_forward.1} parent=0 // pred_check_branch
    %18 = sbr.rel (0) target = $region17
  $region16: #{bert_similarity_forward.1} parent=0 // pred_region
    _
  $region17: #{bert_similarity_forward.1} parent=0 // pred_fallthru
    _
  // Predicated region
  $region18: #{bert_similarity_forward.1} parent=0 // pred_check
    _
  $region19: #{bert_similarity_forward.1} parent=0 // pred_check_branch
    %20 = sbr.rel (0) target = $region21
  $region20: #{bert_similarity_forward.1} parent=0 // pred_region
    _
  $region21: #{bert_similarity_forward.1} parent=0 // pred_fallthru
    _
  // Predicated region
  $region22: #{bert_similarity_forward.1} parent=0 // pred_check
    _
  $region23: #{bert_similarity_forward.1} parent=0 // pred_check_branch
    %22 = sbr.rel (0) target = $region25
  $region24: #{bert_similarity_forward.1} parent=0 // pred_region
    _
  $region25: #{bert_similarity_forward.1} parent=0 // pred_fallthru
    _
  %v23 = vld [vmem:[%s3] sm:$0xff]
  %v24 = vld [vmem:[%s3 + $0x10] sm:$0xff]
  %v25 = vld [vmem:[%s3 + $0x20] sm:$0xff]
  %v26 = vld [vmem:[%s3 + $0x30] sm:$0xff]
  %v27 = vld [vmem:[%s3 + $0x8] sm:$0xff]
  %v28 = vld [vmem:[%s3 + $0x18] sm:$0xff]
  %v29 = vld [vmem:[%s3 + $0x28] sm:$0xff]
  %v30 = vld [vmem:[%s3 + $0x38] sm:$0xff]
  %v31 = vld [vmem:[%s4] sm:$0xff]
  %v32 = vld [vmem:[%s4 + $0x8] sm:$0xff]
  %v33 = vld [vmem:[%s4 + $0x10] sm:$0xff]
  %v34 = vld [vmem:[%s4 + $0x18] sm:$0xff]
  %v35 = vld [vmem:[%s4 + $0x20] sm:$0xff]
  %v36 = vld [vmem:[%s4 + $0x28] sm:$0xff]
  %v37 = vld [vmem:[%s4 + $0x30] sm:$0xff]
  %v38 = vld [vmem:[%s4 + $0x38] sm:$0xff]
  %v39 = vld [vmem:[%s5] sm:$0xff]
  %v40 = vld [vmem:[%s5 + $0x8] sm:$0x1]
  %v41 = vld [vmem:[%s5 + $0x9] sm:$0x1]
  %v42 = vld [vmem:[%s5 + $0xa] sm:$0x1]
  %v43 = vld [vmem:[%s5 + $0xb] sm:$0x1]
  %v44 = vld [vmem:[%s5 + $0xc] sm:$0x1]
  %v45 = vld [vmem:[%s5 + $0xd] sm:$0x1]
  %v46 = vld [vmem:[%s5 + $0xe] sm:$0x1]
  %v47 = vld [vmem:[%s5 + $0xf] sm:$0x1]
  %v48 = vld [vmem:[%s5 + $0x10] sm:$0x1]
  %v49 = vld [vmem:[%s5 + $0x11] sm:$0x1]
  %v50 = vld [vmem:[%s5 + $0x12] sm:$0x1]
  %v51 = vld [vmem:[%s5 + $0x13] sm:$0x1]
  %v52 = vlaneseq
  %v53 = vand.u32 %v52, 127
  %v54 = vld [vmem:[%s0] sm:$0xff]
  %v55 = vld [vmem:[%s0 + $0x8] sm:$0xff]
  %v56 = vld [vmem:[%s0 + $0x10] sm:$0xff]
  %v57 = vld [vmem:[%s0 + $0x18] sm:$0xff]
  %58 = vset.pattern.permute.xlu0 0
  %59 = vperm.xlu0 %58, %v54
  %v60 = vpop.permute.xlu0 %59
  %61 = vset.pattern.permute.xlu0 0
  %62 = vperm.xlu0 %61, %v55
  %v63 = vpop.permute.xlu0 %62
  %64 = vset.pattern.permute.xlu0 0
  %65 = vperm.xlu0 %64, %v56
  %v66 = vpop.permute.xlu0 %65
  %67 = vset.pattern.permute.xlu0 0
  %68 = vperm.xlu0 %67, %v57
  %v69 = vpop.permute.xlu0 %68
  %vm70 = vcmp.eq.s32.totalorder %v53, %v60
  %vm71 = vcmp.eq.s32.totalorder %v53, %v63
  %vm72 = vcmp.eq.s32.totalorder %v53, %v66
  %vm73 = vcmp.eq.s32.totalorder %v53, %v69
  %v74 = vsel %vm70, 1, 0
  %v75 = vsel %vm71, 1, 0
  %v76 = vsel %vm72, 1, 0
  %v77 = vsel %vm73, 1, 0
  %v78 = vcvt.s32.f32 %v74
  %v79 = vcvt.s32.f32 %v75
  %v80 = vcvt.s32.f32 %v76
  %v81 = vcvt.s32.f32 %v77
  %v82 = vld [vmem:[%s2] sm:$0xff]
  %v83 = vld [vmem:[%s2 + $0x8] sm:$0xff]
  %v84 = vld [vmem:[%s2 + $0x10] sm:$0xff]
  %v85 = vld [vmem:[%s2 + $0x18] sm:$0xff]
  %v86 = vld [vmem:[%s2 + $0x20] sm:$0xff]
  %v87 = vld [vmem:[%s2 + $0x28] sm:$0xff]
  %v88 = vld [vmem:[%s2 + $0x30] sm:$0xff]
  %v89 = vld [vmem:[%s2 + $0x38] sm:$0xff]
  %v90 = vld [vmem:[%s2 + $0x40] sm:$0xff]
  %v91 = vld [vmem:[%s2 + $0x48] sm:$0xff]
  %v92 = vld [vmem:[%s2 + $0x50] sm:$0xff]
  %v93 = vld [vmem:[%s2 + $0x58] sm:$0xff]
  %v94 = vld [vmem:[%s2 + $0x60] sm:$0xff]
  %v95 = vld [vmem:[%s2 + $0x68] sm:$0xff]
  %v96 = vld [vmem:[%s2 + $0x70] sm:$0xff]
  %v97 = vld [vmem:[%s2 + $0x78] sm:$0xff]
  %98 = vmatprep.subr.mxu0 0.0
  %99 = vmatpush1.msra.mxu0 %v82
  %100 = vmatprep.subr.mxu0 0.0
  %101 = vmatpush1.msra.mxu0 %v83
  %102 = vmatprep.subr.mxu0 0.0
  %103 = vmatpush1.msra.mxu0 %v84
  %104 = vmatprep.subr.mxu0 0.0
  %105 = vmatpush1.msra.mxu0 %v85
  %106 = vmatprep.subr.mxu0 0.0
  %107 = vmatpush1.msra.mxu0 %v86
  %108 = vmatprep.subr.mxu0 0.0
  %109 = vmatpush1.msra.mxu0 %v87
  %110 = vmatprep.subr.mxu0 0.0
  %111 = vmatpush1.msra.mxu0 %v88
  %112 = vmatprep.subr.mxu0 0.0
  %113 = vmatpush1.msra.mxu0 %v89
  %114 = vmatprep.subr.mxu0 0.0
  %115 = vmatpush1.msra.mxu0 %v90
  %116 = vmatprep.subr.mxu0 0.0
  %117 = vmatpush1.msra.mxu0 %v91
  %118 = vmatprep.subr.mxu0 0.0
  %119 = vmatpush1.msra.mxu0 %v92
  %120 = vmatprep.subr.mxu0 0.0
  %121 = vmatpush1.msra.mxu0 %v93
  %122 = vmatprep.subr.mxu0 0.0
  %123 = vmatpush1.msra.mxu0 %v94
  %124 = vmatprep.subr.mxu0 0.0
  %125 = vmatpush1.msra.mxu0 %v95
  %126 = vmatprep.subr.mxu0 0.0
  %127 = vmatpush1.msra.mxu0 %v96
  %128 = vmatprep.subr.mxu0 0.0
  %129 = vmatpush1.msra.mxu0 %v97
  %130 = vmatprep.subr.mxu0 0.0
  %131 = vmatpush1.msra.mxu0 0.0
  %132 = vmatprep.subr.mxu0 0.0
  %133 = vmatpush1.msra.mxu0 0.0
  %134 = vmatprep.subr.mxu0 0.0
  %135 = vmatpush1.msra.mxu0 0.0
  %136 = vmatprep.subr.mxu0 0.0
  %137 = vmatpush1.msra.mxu0 0.0
  %138 = vmatprep.subr.mxu0 0.0
  %139 = vmatpush1.msra.mxu0 0.0
  %140 = vmatprep.subr.mxu0 0.0
  %141 = vmatpush1.msra.mxu0 0.0
  %142 = vmatprep.subr.mxu0 0.0
  %143 = vmatpush1.msra.mxu0 0.0
  %144 = vmatprep.subr.mxu0 0.0
  %145 = vmatpush1.msra.mxu0 0.0
  %146 = vmatprep.subr.mxu0 0.0
  %147 = vmatpush1.msra.mxu0 0.0
  %148 = vmatprep.subr.mxu0 0.0
  %149 = vmatpush1.msra.mxu0 0.0
  %150 = vmatprep.subr.mxu0 0.0
  %151 = vmatpush1.msra.mxu0 0.0
  %152 = vmatprep.subr.mxu0 0.0
  %153 = vmatpush1.msra.mxu0 0.0
  %154 = vmatprep.subr.mxu0 0.0
  %155 = vmatpush1.msra.mxu0 0.0
  %156 = vmatprep.subr.mxu0 0.0
  %157 = vmatpush1.msra.mxu0 0.0
  %158 = vmatprep.subr.mxu0 0.0
  %159 = vmatpush1.msra.mxu0 0.0
  %160 = vmatprep.subr.mxu0 0.0
  %161 = vmatpush1.msra.mxu0 0.0
  %162 = vmatprep.mubr.f32.mxu0 0.0
  %163 = vmatmul.mubr.f32.gmra.mrb[0].mxu0 %v78
  %v164 = vpop.f32.mrb[0].mxu0
  %v165 = vadd.f32 0.0, %v164
  %v166 = vpop.f32.mrb[0].mxu0
  %167 = vmatprep.mubr.f32.mxu0 0.0
  %168 = vmatmul.mubr.f32.gmra.mrb[0].mxu0 %v79
  %v169 = vpop.f32.mrb[0].mxu0
  %v170 = vadd.f32 0.0, %v169
  %v171 = vpop.f32.mrb[0].mxu0
  %172 = vmatprep.mubr.f32.mxu0 0.0
  %173 = vmatmul.mubr.f32.gmra.mrb[0].mxu0 %v80
  %v174 = vpop.f32.mrb[0].mxu0
  %v175 = vadd.f32 0.0, %v174
  %v176 = vpop.f32.mrb[0].mxu0
  %177 = vmatprep.mubr.f32.mxu0 0.0
  %178 = vmatmul.mubr.f32.gmra.mrb[0].mxu0 %v81
  %v179 = vpop.f32.mrb[0].mxu0
  %v180 = vadd.f32 0.0, %v179
  %v181 = vpop.f32.mrb[0].mxu0
  %182 = vdwg.mxu0
  %v183 = vadd.f32 %v165, %v39
  %v184 = vadd.f32 %v170, %v39
  %v185 = vadd.f32 %v175, %v39
  %v186 = vadd.f32 %v180, %v39
  %v187 = vlaneseq
  %v188 = vshrl.u32 %v187, 7
  %v189 = vsub.s32 0, %v188
  %v190 = vrot.slane %v40, %v189
  %v191 = vadd.f32 %v183, %v190
  %v192 = vadd.f32 %v184, %v190
  %v193 = vadd.f32 %v185, %v190
  %v194 = vadd.f32 %v186, %v190
  %vm195 = vcmask 261120
  %v196 = vsel %vm195, %v191, 0.0
  %197 = vadd.xlane.f32.xlu0 %v196
  %v198 = vpop.xlane.xlu0 %197
  %v199 = vsel %vm195, %v192, 0.0
  %200 = vadd.xlane.f32.xlu0 %v199
  %v201 = vpop.xlane.xlu0 %200
  %v202 = vsel %vm195, %v193, 0.0
  %203 = vadd.xlane.f32.xlu0 %v202
  %v204 = vpop.xlane.xlu0 %203
  %v205 = vsel %vm195, %v194, 0.0
  %206 = vadd.xlane.f32.xlu0 %v205
  %v207 = vpop.xlane.xlu0 %206
  %v208 = vrcp.pop 32.0
  %v209 = vmul.f32 %v198, %v208
  %v210 = vmul.f32 %v201, %v208
  %v211 = vmul.f32 %v204, %v208
  %v212 = vmul.f32 %v207, %v208
  %v213 = vsub.f32 %v191, %v209
  %v214 = vsub.f32 %v192, %v210
  %v215 = vsub.f32 %v193, %v211
  %v216 = vsub.f32 %v194, %v212
  %v217 = vmul.f32 %v213, %v213
  %v218 = vmul.f32 %v214, %v214
  %v219 = vmul.f32 %v215, %v215
  %v220 = vmul.f32 %v216, %v216
  %v221 = vsel %vm195, %v217, 0.0
  %222 = vadd.xlane.f32.xlu0 %v221
  %v223 = vpop.xlane.xlu0 %222
  %v224 = vsel %vm195, %v218, 0.0
  %225 = vadd.xlane.f32.xlu0 %v224
  %v226 = vpop.xlane.xlu0 %225
  %v227 = vsel %vm195, %v219, 0.0
  %228 = vadd.xlane.f32.xlu0 %v227
  %v229 = vpop.xlane.xlu0 %228
  %v230 = vsel %vm195, %v220, 0.0
  %231 = vadd.xlane.f32.xlu0 %v230
  %v232 = vpop.xlane.xlu0 %231
  %v233 = vmul.f32 %v223, %v208
  %v234 = vmul.f32 %v226, %v208
  %v235 = vmul.f32 %v229, %v208
  %v236 = vmul.f32 %v232, %v208
  %v237 = vadd.f32 %v233, 1e-12
  %v238 = vadd.f32 %v234, 1e-12
  %v239 = vadd.f32 %v235, 1e-12
  %v240 = vadd.f32 %v236, 1e-12
  %v241 = vrsqrt.pop %v237
  %v242 = vrsqrt.pop %v238
  %v243 = vrsqrt.pop %v239
  %v244 = vrsqrt.pop %v240
  %v245 = vmul.f32 %v213, %v241
  %v246 = vmul.f32 %v214, %v242
  %v247 = vmul.f32 %v215, %v243
  %v248 = vmul.f32 %v216, %v244
  %v249 = vlaneseq
  %v250 = vshrl.u32 %v249, 7
  %v251 = vsub.s32 0, %v250
  %v252 = vrot.slane %v41, %v251
  %v253 = vmul.f32 %v245, %v252
  %v254 = vmul.f32 %v246, %v252
  %v255 = vmul.f32 %v247, %v252
  %v256 = vmul.f32 %v248, %v252
  %v257 = vlaneseq
  %v258 = vshrl.u32 %v257, 7
  %v259 = vsub.s32 0, %v258
  %v260 = vrot.slane %v42, %v259
  %v261 = vadd.f32 %v253, %v260
  %v262 = vadd.f32 %v254, %v260
  %v263 = vadd.f32 %v255, %v260
  %v264 = vadd.f32 %v256, %v260
  %v265 = vld [vmem:[%s1] sm:$0x1]
  %v266 = vld [vmem:[%s1 + $0x1] sm:$0x1]
  %v267 = vld [vmem:[%s1 + $0x2] sm:$0x1]
  %v268 = vld [vmem:[%s1 + $0x3] sm:$0x1]
  %v269 = vsub.f32 1.0, %v265
  %v270 = vsub.f32 1.0, %v266
  %v271 = vsub.f32 1.0, %v267
  %v272 = vsub.f32 1.0, %v268
  %v273 = vmul.f32 %v269, -1e+09
  %v274 = vmul.f32 %v270, -1e+09
  %v275 = vmul.f32 %v271, -1e+09
  %v276 = vmul.f32 %v272, -1e+09
  %v277 = vlaneseq
  %v278 = vshrl.u32 %v277, 7
  %v279 = vsub.s32 0, %v278
  %v280 = vrot.slane %v43, %v279
  %v282 = vsel %vm195, %v261, 0
  %v285 = vsel %vm195, %v262, 0
  %v288 = vsel %vm195, %v263, 0
  %v291 = vsel %vm195, %v264, 0
  %293 = vmatprep.subr.mxu0 0.0
  %294 = vmatpush1.msra.mxu0 %v23
  %295 = vmatprep.subr.mxu0 0.0
  %296 = vmatpush1.msra.mxu0 %v24
  %297 = vmatprep.subr.mxu0 0.0
  %298 = vmatpush1.msra.mxu0 %v25
  %299 = vmatprep.subr.mxu0 0.0
  %300 = vmatpush1.msra.mxu0 %v26
  %301 = vmatprep.subr.mxu0 0.0
  %302 = vmatpush1.msra.mxu0 0.0
  %303 = vmatprep.subr.mxu0 0.0
  %304 = vmatpush1.msra.mxu0 0.0
  %305 = vmatprep.subr.mxu0 0.0
  %306 = vmatpush1.msra.mxu0 0.0
  %307 = vmatprep.subr.mxu0 0.0
  %308 = vmatpush1.msra.mxu0 0.0
  %309 = vmatprep.subr.mxu0 0.0
  %310 = vmatpush1.msra.mxu0 0.0
  %311 = vmatprep.subr.mxu0 0.0
  %312 = vmatpush1.msra.mxu0 0.0
  %313 = vmatprep.subr.mxu0 0.0
  %314 = vmatpush1.msra.mxu0 0.0
  %315 = vmatprep.subr.mxu0 0.0
  %316 = vmatpush1.msra.mxu0 0.0
  %317 = vmatprep.subr.mxu0 0.0
  %318 = vmatpush1.msra.mxu0 0.0
  %319 = vmatprep.subr.mxu0 0.0
  %320 = vmatpush1.msra.mxu0 0.0
  %321 = vmatprep.subr.mxu0 0.0
  %322 = vmatpush1.msra.mxu0 0.0
  %323 = vmatprep.subr.mxu0 0.0
  %324 = vmatpush1.msra.mxu0 0.0
  %325 = vmatprep.subr.mxu0 0.0
  %326 = vmatpush1.msra.mxu0 0.0
  %327 = vmatprep.subr.mxu0 0.0
  %328 = vmatpush1.msra.mxu0 0.0
  %329 = vmatprep.subr.mxu0 0.0
  %330 = vmatpush1.msra.mxu0 0.0
  %331 = vmatprep.subr.mxu0 0.0
  %332 = vmatpush1.msra.mxu0 0.0
  %333 = vmatprep.subr.mxu0 0.0
  %334 = vmatpush1.msra.mxu0 0.0
  %335 = vmatprep.subr.mxu0 0.0
  %336 = vmatpush1.msra.mxu0 0.0
  %337 = vmatprep.subr.mxu0 0.0
  %338 = vmatpush1.msra.mxu0 0.0
  %339 = vmatprep.subr.mxu0 0.0
  %340 = vmatpush1.msra.mxu0 0.0
  %341 = vmatprep.subr.mxu0 0.0
  %342 = vmatpush1.msra.mxu0 0.0
  %343 = vmatprep.subr.mxu0 0.0
  %344 = vmatpush1.msra.mxu0 0.0
  %345 = vmatprep.subr.mxu0 0.0
  %346 = vmatpush1.msra.mxu0 0.0
  %347 = vmatprep.subr.mxu0 0.0
  %348 = vmatpush1.msra.mxu0 0.0
  %349 = vmatprep.subr.mxu0 0.0
  %350 = vmatpush1.msra.mxu0 0.0
  %351 = vmatprep.subr.mxu0 0.0
  %352 = vmatpush1.msra.mxu0 0.0
  %353 = vmatprep.subr.mxu0 0.0
  %354 = vmatpush1.msra.mxu0 0.0
  %355 = vmatprep.subr.mxu0 0.0
  %356 = vmatpush1.msra.mxu0 0.0
  %357 = vmatprep.mubr.f32.mxu0 0.0
  %358 = vmatmul.mubr.f32.gmra.mrb[0].mxu0 %v282
  %v359 = vpop.f32.mrb[0].mxu0
  %v360 = vadd.f32 %v280, %v359
  %v361 = vpop.f32.mrb[0].mxu0
  %362 = vmatprep.mubr.f32.mxu0 0.0
  %363 = vmatmul.mubr.f32.gmra.mrb[0].mxu0 %v285
  %v364 = vpop.f32.mrb[0].mxu0
  %v365 = vadd.f32 %v280, %v364
  %v366 = vpop.f32.mrb[0].mxu0
  %367 = vmatprep.mubr.f32.mxu0 0.0
  %368 = vmatmul.mubr.f32.gmra.mrb[0].mxu0 %v288
  %v369 = vpop.f32.mrb[0].mxu0
  %v370 = vadd.f32 %v280, %v369
  %v371 = vpop.f32.mrb[0].mxu0
  %372 = vmatprep.mubr.f32.mxu0 0.0
  %373 = vmatmul.mubr.f32.gmra.mrb[0].mxu0 %v291
  %v374 = vpop.f32.mrb[0].mxu0
  %v375 = vadd.f32 %v280, %v374
  %v376 = vpop.f32.mrb[0].mxu0
  %377 = vdwg.mxu0
  %379 = vrot.lane.b32.xlu0 %v360, 96
  %v380 = vpop.permute.xlu0 %379
  %vm381 = vcmask 130048
  %v382 = vsel %vm381, %v360, 0
  %v384 = vsel %vm381, %v380, 0
  %386 = vmatprep.subr.mxu0 0.0
  %387 = vmatpush1.xpose.msra.mxu0 %v384
  %388 = vmatprep.subr.mxu0 0.0
  %389 = vmatpush1.xpose.msra.mxu0 0.0
  %390 = vmatprep.subr.mxu0 0.0
  %391 = vmatpush1.xpose.msra.mxu0 0.0
  %392 = vmatprep.subr.mxu0 0.0
  %393 = vmatpush1.xpose.msra.mxu0 0.0
  %394 = vmatprep.subr.mxu0 0.0
  %395 = vmatpush1.xpose.msra.mxu0 0.0
  %396 = vmatprep.subr.mxu0 0.0
  %397 = vmatpush1.xpose.msra.mxu0 0.0
  %398 = vmatprep.subr.mxu0 0.0
  %399 = vmatpush1.xpose.msra.mxu0 0.0
  %400 = vmatprep.subr.mxu0 0.0
  %401 = vmatpush1.xpose.msra.mxu0 0.0
  %402 = vmatprep.subr.mxu0 0.0
  %403 = vmatpush1.xpose.msra.mxu0 0.0
  %404 = vmatprep.subr.mxu0 0.0
  %405 = vmatpush1.xpose.msra.mxu0 0.0
  %406 = vmatprep.subr.mxu0 0.0
  %407 = vmatpush1.xpose.msra.mxu0 0.0
  %408 = vmatprep.subr.mxu0 0.0
  %409 = vmatpush1.xpose.msra.mxu0 0.0
  %410 = vmatprep.subr.mxu0 0.0
  %411 = vmatpush1.xpose.msra.mxu0 0.0
  %412 = vmatprep.subr.mxu0 0.0
  %413 = vmatpush1.xpose.msra.mxu0 0.0
  %414 = vmatprep.subr.mxu0 0.0
  %415 = vmatpush1.xpose.msra.mxu0 0.0
  %416 = vmatprep.subr.mxu0 0.0
  %417 = vmatpush1.xpose.msra.mxu0 0.0
  %418 = vmatprep.subr.mxu0 0.0
  %419 = vmatpush1.xpose.msra.mxu0 0.0
  %420 = vmatprep.subr.mxu0 0.0
  %421 = vmatpush1.xpose.msra.mxu0 0.0
  %422 = vmatprep.subr.mxu0 0.0
  %423 = vmatpush1.xpose.msra.mxu0 0.0
  %424 = vmatprep.subr.mxu0 0.0
  %425 = vmatpush1.xpose.msra.mxu0 0.0
  %426 = vmatprep.subr.mxu0 0.0
  %427 = vmatpush1.xpose.msra.mxu0 0.0
  %428 = vmatprep.subr.mxu0 0.0
  %429 = vmatpush1.xpose.msra.mxu0 0.0
  %430 = vmatprep.subr.mxu0 0.0
  %431 = vmatpush1.xpose.msra.mxu0 0.0
  %432 = vmatprep.subr.mxu0 0.0
  %433 = vmatpush1.xpose.msra.mxu0 0.0
  %434 = vmatprep.subr.mxu0 0.0
  %435 = vmatpush1.xpose.msra.mxu0 0.0
  %436 = vmatprep.subr.mxu0 0.0
  %437 = vmatpush1.xpose.msra.mxu0 0.0
  %438 = vmatprep.subr.mxu0 0.0
  %439 = vmatpush1.xpose.msra.mxu0 0.0
  %440 = vmatprep.subr.mxu0 0.0
  %441 = vmatpush1.xpose.msra.mxu0 0.0
  %442 = vmatprep.subr.mxu0 0.0
  %443 = vmatpush1.xpose.msra.mxu0 0.0
  %444 = vmatprep.subr.mxu0 0.0
  %445 = vmatpush1.xpose.msra.mxu0 0.0
  %446 = vmatprep.subr.mxu0 0.0
  %447 = vmatpush1.xpose.msra.mxu0 0.0
  %448 = vmatprep.subr.mxu0 0.0
  %449 = vmatpush1.xpose.msra.mxu0 0.0
  %450 = vmatprep.mubr.f32.mxu0 0.0
  %451 = vmatmul.mubr.f32.gmra.mrb[0].mxu0 %v382
  %v452 = vpop.f32.mrb[0].mxu0
  %v453 = vadd.f32 0.0, %v452
  %v454 = vpop.f32.mrb[0].mxu0
  %455 = vdwg.mxu0
  %457 = vrot.lane.b32.xlu0 %v365, 96
  %v458 = vpop.permute.xlu0 %457
  %v459 = vsel %vm381, %v365, 0
  %v461 = vsel %vm381, %v458, 0
  %463 = vmatprep.subr.mxu0 0.0
  %464 = vmatpush1.xpose.msra.mxu0 %v461
  %465 = vmatprep.subr.mxu0 0.0
  %466 = vmatpush1.xpose.msra.mxu0 0.0
  %467 = vmatprep.subr.mxu0 0.0
  %468 = vmatpush1.xpose.msra.mxu0 0.0
  %469 = vmatprep.subr.mxu0 0.0
  %470 = vmatpush1.xpose.msra.mxu0 0.0
  %471 = vmatprep.subr.mxu0 0.0
  %472 = vmatpush1.xpose.msra.mxu0 0.0
  %473 = vmatprep.subr.mxu0 0.0
  %474 = vmatpush1.xpose.msra.mxu0 0.0
  %475 = vmatprep.subr.mxu0 0.0
  %476 = vmatpush1.xpose.msra.mxu0 0.0
  %477 = vmatprep.subr.mxu0 0.0
  %478 = vmatpush1.xpose.msra.mxu0 0.0
  %479 = vmatprep.subr.mxu0 0.0
  %480 = vmatpush1.xpose.msra.mxu0 0.0
  %481 = vmatprep.subr.mxu0 0.0
  %482 = vmatpush1.xpose.msra.mxu0 0.0
  %483 = vmatprep.subr.mxu0 0.0
  %484 = vmatpush1.xpose.msra.mxu0 0.0
  %485 = vmatprep.subr.mxu0 0.0
  %486 = vmatpush1.xpose.msra.mxu0 0.0
  %487 = vmatprep.subr.mxu0 0.0
  %488 = vmatpush1.xpose.msra.mxu0 0.0
  %489 = vmatprep.subr.mxu0 0.0
  %490 = vmatpush1.xpose.msra.mxu0 0.0
  %491 = vmatprep.subr.mxu0 0.0
  %492 = vmatpush1.xpose.msra.mxu0 0.0
  %493 = vmatprep.subr.mxu0 0.0
  %494 = vmatpush1.xpose.msra.mxu0 0.0
  %495 = vmatprep.subr.mxu0 0.0
  %496 = vmatpush1.xpose.msra.mxu0 0.0
  %497 = vmatprep.subr.mxu0 0.0
  %498 = vmatpush1.xpose.msra.mxu0 0.0
  %499 = vmatprep.subr.mxu0 0.0
  %500 = vmatpush1.xpose.msra.mxu0 0.0
  %501 = vmatprep.subr.mxu0 0.0
  %502 = vmatpush1.xpose.msra.mxu0 0.0
  %503 = vmatprep.subr.mxu0 0.0
  %504 = vmatpush1.xpose.msra.mxu0 0.0
  %505 = vmatprep.subr.mxu0 0.0
  %506 = vmatpush1.xpose.msra.mxu0 0.0
  %507 = vmatprep.subr.mxu0 0.0
  %508 = vmatpush1.xpose.msra.mxu0 0.0
  %509 = vmatprep.subr.mxu0 0.0
  %510 = vmatpush1.xpose.msra.mxu0 0.0
  %511 = vmatprep.subr.mxu0 0.0
  %512 = vmatpush1.xpose.msra.mxu0 0.0
  %513 = vmatprep.subr.mxu0 0.0
  %514 = vmatpush1.xpose.msra.mxu0 0.0
  %515 = vmatprep.subr.mxu0 0.0
  %516 = vmatpush1.xpose.msra.mxu0 0.0
  %517 = vmatprep.subr.mxu0 0.0
  %518 = vmatpush1.xpose.msra.mxu0 0.0
  %519 = vmatprep.subr.mxu0 0.0
  %520 = vmatpush1.xpose.msra.mxu0 0.0
  %521 = vmatprep.subr.mxu0 0.0
  %522 = vmatpush1.xpose.msra.mxu0 0.0
  %523 = vmatprep.subr.mxu0 0.0
  %524 = vmatpush1.xpose.msra.mxu0 0.0
  %525 = vmatprep.subr.mxu0 0.0
  %526 = vmatpush1.xpose.msra.mxu0 0.0
  %527 = vmatprep.mubr.f32.mxu0 0.0
  %528 = vmatmul.mubr.f32.gmra.mrb[0].mxu0 %v459
  %v529 = vpop.f32.mrb[0].mxu0
  %v530 = vadd.f32 0.0, %v529
  %v531 = vpop.f32.mrb[0].mxu0
  %532 = vdwg.mxu0
  %534 = vrot.lane.b32.xlu0 %v370, 96
  %v535 = vpop.permute.xlu0 %534
  %v536 = vsel %vm381, %v370, 0
  %v538 = vsel %vm381, %v535, 0
  %540 = vmatprep.subr.mxu0 0.0
  %541 = vmatpush1.xpose.msra.mxu0 %v538
  %542 = vmatprep.subr.mxu0 0.0
  %543 = vmatpush1.xpose.msra.mxu0 0.0
  %544 = vmatprep.subr.mxu0 0.0
  %545 = vmatpush1.xpose.msra.mxu0 0.0
  %546 = vmatprep.subr.mxu0 0.0
  %547 = vmatpush1.xpose.msra.mxu0 0.0
  %548 = vmatprep.subr.mxu0 0.0
  %549 = vmatpush1.xpose.msra.mxu0 0.0
  %550 = vmatprep.subr.mxu0 0.0
  %551 = vmatpush1.xpose.msra.mxu0 0.0
  %552 = vmatprep.subr.mxu0 0.0
  %553 = vmatpush1.xpose.msra.mxu0 0.0
  %554 = vmatprep.subr.mxu0 0.0
  %555 = vmatpush1.xpose.msra.mxu0 0.0
  %556 = vmatprep.subr.mxu0 0.0
  %557 = vmatpush1.xpose.msra.mxu0 0.0
  %558 = vmatprep.subr.mxu0 0.0
  %559 = vmatpush1.xpose.msra.mxu0 0.0
  %560 = vmatprep.subr.mxu0 0.0
  %561 = vmatpush1.xpose.msra.mxu0 0.0
  %562 = vmatprep.subr.mxu0 0.0
  %563 = vmatpush1.xpose.msra.mxu0 0.0
  %564 = vmatprep.subr.mxu0 0.0
  %565 = vmatpush1.xpose.msra.mxu0 0.0
  %566 = vmatprep.subr.mxu0 0.0
  %567 = vmatpush1.xpose.msra.mxu0 0.0
  %568 = vmatprep.subr.mxu0 0.0
  %569 = vmatpush1.xpose.msra.mxu0 0.0
  %570 = vmatprep.subr.mxu0 0.0
  %571 = vmatpush1.xpose.msra.mxu0 0.0
  %572 = vmatprep.subr.mxu0 0.0
  %573 = vmatpush1.xpose.msra.mxu0 0.0
  %574 = vmatprep.subr.mxu0 0.0
  %575 = vmatpush1.xpose.msra.mxu0 0.0
  %576 = vmatprep.subr.mxu0 0.0
  %577 = vmatpush1.xpose.msra.mxu0 0.0
  %578 = vmatprep.subr.mxu0 0.0
  %579 = vmatpush1.xpose.msra.mxu0 0.0
  %580 = vmatprep.subr.mxu0 0.0
  %581 = vmatpush1.xpose.msra.mxu0 0.0
  %582 = vmatprep.subr.mxu0 0.0
  %583 = vmatpush1.xpose.msra.mxu0 0.0
  %584 = vmatprep.subr.mxu0 0.0
  %585 = vmatpush1.xpose.msra.mxu0 0.0
  %586 = vmatprep.subr.mxu0 0.0
  %587 = vmatpush1.xpose.msra.mxu0 0.0
  %588 = vmatprep.subr.mxu0 0.0
  %589 = vmatpush1.xpose.msra.mxu0 0.0
  %590 = vmatprep.subr.mxu0 0.0
  %591 = vmatpush1.xpose.msra.mxu0 0.0
  %592 = vmatprep.subr.mxu0 0.0
  %593 = vmatpush1.xpose.msra.mxu0 0.0
  %594 = vmatprep.subr.mxu0 0.0
  %595 = vmatpush1.xpose.msra.mxu0 0.0
  %596 = vmatprep.subr.mxu0 0.0
  %597 = vmatpush1.xpose.msra.mxu0 0.0
  %598 = vmatprep.subr.mxu0 0.0
  %599 = vmatpush1.xpose.msra.mxu0 0.0
  %600 = vmatprep.subr.mxu0 0.0
  %601 = vmatpush1.xpose.msra.mxu0 0.0
  %602 = vmatprep.subr.mxu0 0.0
  %603 = vmatpush1.xpose.msra.mxu0 0.0
  %604 = vmatprep.mubr.f32.mxu0 0.0
  %605 = vmatmul.mubr.f32.gmra.mrb[0].mxu0 %v536
  %v606 = vpop.f32.mrb[0].mxu0
  %v607 = vadd.f32 0.0, %v606
  %v608 = vpop.f32.mrb[0].mxu0
  %609 = vdwg.mxu0
  %611 = vrot.lane.b32.xlu0 %v375, 96
  %v612 = vpop.permute.xlu0 %611
  %v613 = vsel %vm381, %v375, 0
  %v615 = vsel %vm381, %v612, 0
  %617 = vmatprep.subr.mxu0 0.0
  %618 = vmatpush1.xpose.msra.mxu0 %v615
  %619 = vmatprep.subr.mxu0 0.0
  %620 = vmatpush1.xpose.msra.mxu0 0.0
  %621 = vmatprep.subr.mxu0 0.0
  %622 = vmatpush1.xpose.msra.mxu0 0.0
  %623 = vmatprep.subr.mxu0 0.0
  %624 = vmatpush1.xpose.msra.mxu0 0.0
  %625 = vmatprep.subr.mxu0 0.0
  %626 = vmatpush1.xpose.msra.mxu0 0.0
  %627 = vmatprep.subr.mxu0 0.0
  %628 = vmatpush1.xpose.msra.mxu0 0.0
  %629 = vmatprep.subr.mxu0 0.0
  %630 = vmatpush1.xpose.msra.mxu0 0.0
  %631 = vmatprep.subr.mxu0 0.0
  %632 = vmatpush1.xpose.msra.mxu0 0.0
  %633 = vmatprep.subr.mxu0 0.0
  %634 = vmatpush1.xpose.msra.mxu0 0.0
  %635 = vmatprep.subr.mxu0 0.0
  %636 = vmatpush1.xpose.msra.mxu0 0.0
  %637 = vmatprep.subr.mxu0 0.0
  %638 = vmatpush1.xpose.msra.mxu0 0.0
  %639 = vmatprep.subr.mxu0 0.0
  %640 = vmatpush1.xpose.msra.mxu0 0.0
  %641 = vmatprep.subr.mxu0 0.0
  %642 = vmatpush1.xpose.msra.mxu0 0.0
  %643 = vmatprep.subr.mxu0 0.0
  %644 = vmatpush1.xpose.msra.mxu0 0.0
  %645 = vmatprep.subr.mxu0 0.0
  %646 = vmatpush1.xpose.msra.mxu0 0.0
  %647 = vmatprep.subr.mxu0 0.0
  %648 = vmatpush1.xpose.msra.mxu0 0.0
  %649 = vmatprep.subr.mxu0 0.0
  %650 = vmatpush1.xpose.msra.mxu0 0.0
  %651 = vmatprep.subr.mxu0 0.0
  %652 = vmatpush1.xpose.msra.mxu0 0.0
  %653 = vmatprep.subr.mxu0 0.0
  %654 = vmatpush1.xpose.msra.mxu0 0.0
  %655 = vmatprep.subr.mxu0 0.0
  %656 = vmatpush1.xpose.msra.mxu0 0.0
  %657 = vmatprep.subr.mxu0 0.0
  %658 = vmatpush1.xpose.msra.mxu0 0.0
  %659 = vmatprep.subr.mxu0 0.0
  %660 = vmatpush1.xpose.msra.mxu0 0.0
  %661 = vmatprep.subr.mxu0 0.0
  %662 = vmatpush1.xpose.msra.mxu0 0.0
  %663 = vmatprep.subr.mxu0 0.0
  %664 = vmatpush1.xpose.msra.mxu0 0.0
  %665 = vmatprep.subr.mxu0 0.0
  %666 = vmatpush1.xpose.msra.mxu0 0.0
  %667 = vmatprep.subr.mxu0 0.0
  %668 = vmatpush1.xpose.msra.mxu0 0.0
  %669 = vmatprep.subr.mxu0 0.0
  %670 = vmatpush1.xpose.msra.mxu0 0.0
  %671 = vmatprep.subr.mxu0 0.0
  %672 = vmatpush1.xpose.msra.mxu0 0.0
  %673 = vmatprep.subr.mxu0 0.0
  %674 = vmatpush1.xpose.msra.mxu0 0.0
  %675 = vmatprep.subr.mxu0 0.0
  %676 = vmatpush1.xpose.msra.mxu0 0.0
  %677 = vmatprep.subr.mxu0 0.0
  %678 = vmatpush1.xpose.msra.mxu0 0.0
  %679 = vmatprep.subr.mxu0 0.0
  %680 = vmatpush1.xpose.msra.mxu0 0.0
  %681 = vmatprep.mubr.f32.mxu0 0.0
  %682 = vmatmul.mubr.f32.gmra.mrb[0].mxu0 %v613
  %v683 = vpop.f32.mrb[0].mxu0
  %v684 = vadd.f32 0.0, %v683
  %v685 = vpop.f32.mrb[0].mxu0
  %686 = vdwg.mxu0
  %v687 = vmul.f32 %v453, 0.25
  %v688 = vmul.f32 %v530, 0.25
  %v689 = vmul.f32 %v607, 0.25
  %v690 = vmul.f32 %v684, 0.25
  %v695 = vlaneseq
  %v696 = vshrl.u32 %v695, 7
  %v697 = vsub.s32 0, %v696
  %v698 = vrot.slane %v273, %v697
  %v699 = vlaneseq
  %v700 = vshrl.u32 %v699, 7
  %v701 = vsub.s32 0, %v700
  %v702 = vrot.slane %v274, %v701
  %v703 = vlaneseq
  %v704 = vshrl.u32 %v703, 7
  %v705 = vsub.s32 0, %v704
  %v706 = vrot.slane %v275, %v705
  %v707 = vlaneseq
  %v708 = vshrl.u32 %v707, 7
  %v709 = vsub.s32 0, %v708
  %v710 = vrot.slane %v276, %v709
  %v715 = vadd.f32 %v687, %v698
  %v716 = vadd.f32 %v688, %v702
  %v717 = vadd.f32 %v689, %v706
  %v718 = vadd.f32 %v690, %v710
  %vm719 = vcmask 64512
  %v720 = vsel %vm719, %v715, -inf
  %721 = vmax.xlane.f32.xlu0 %v720
  %v722 = vpop.xlane.xlu0 %721
  %v723 = vsel %vm719, %v716, -inf
  %724 = vmax.xlane.f32.xlu0 %v723
  %v725 = vpop.xlane.xlu0 %724
  %v726 = vsel %vm719, %v717, -inf
  %727 = vmax.xlane.f32.xlu0 %v726
  %v728 = vpop.xlane.xlu0 %727
  %v729 = vsel %vm719, %v718, -inf
  %730 = vmax.xlane.f32.xlu0 %v729
  %v731 = vpop.xlane.xlu0 %730
  %v732 = vsub.f32 %v715, %v722
  %v733 = vsub.f32 %v716, %v725
  %v734 = vsub.f32 %v717, %v728
  %v735 = vsub.f32 %v718, %v731
  %v736 = vmul.f32 %v732, 1.442695
  %v737 = vpow.pop %v736
  %v738 = vmul.f32 %v733, 1.442695
  %v739 = vpow.pop %v738
  %v740 = vmul.f32 %v734, 1.442695
  %v741 = vpow.pop %v740
  %v742 = vmul.f32 %v735, 1.442695
  %v743 = vpow.pop %v742
  %v744 = vsel %vm719, %v737, 0.0
  %745 = vadd.xlane.f32.xlu0 %v744
  %v746 = vpop.xlane.xlu0 %745
  %v747 = vsel %vm719, %v739, 0.0
  %748 = vadd.xlane.f32.xlu0 %v747
  %v749 = vpop.xlane.xlu0 %748
  %v750 = vsel %vm719, %v741, 0.0
  %751 = vadd.xlane.f32.xlu0 %v750
  %v752 = vpop.xlane.xlu0 %751
  %v753 = vsel %vm719, %v743, 0.0
  %754 = vadd.xlane.f32.xlu0 %v753
  %v755 = vpop.xlane.xlu0 %754
  %v756 = vrcp.pop %v746
  %v757 = vmul.f32 %v737, %v756
  %v758 = vrcp.pop %v749
  %v759 = vmul.f32 %v739, %v758
  %v760 = vrcp.pop %v752
  %v761 = vmul.f32 %v741, %v760
  %v762 = vrcp.pop %v755
  %v763 = vmul.f32 %v743, %v762
  %764 = vrot.lane.b32.xlu0 %v360, 64
  %v765 = vpop.permute.xlu0 %764
  %v768 = vsel %vm719, %v757, 0
  %770 = vmatprep.subr.mxu0 0.0
  %771 = vmatpush1.msra.mxu0 %v765
  %772 = vmatprep.subr.mxu0 0.0
  %773 = vmatpush1.msra.mxu0 0.0
  %774 = vmatprep.subr.mxu0 0.0
  %775 = vmatpush1.msra.mxu0 0.0
  %776 = vmatprep.subr.mxu0 0.0
  %777 = vmatpush1.msra.mxu0 0.0
  %778 = vmatprep.subr.mxu0 0.0
  %779 = vmatpush1.msra.mxu0 0.0
  %780 = vmatprep.subr.mxu0 0.0
  %781 = vmatpush1.msra.mxu0 0.0
  %782 = vmatprep.subr.mxu0 0.0
  %783 = vmatpush1.msra.mxu0 0.0
  %784 = vmatprep.subr.mxu0 0.0
  %785 = vmatpush1.msra.mxu0 0.0
  %786 = vmatprep.subr.mxu0 0.0
  %787 = vmatpush1.msra.mxu0 0.0
  %788 = vmatprep.subr.mxu0 0.0
  %789 = vmatpush1.msra.mxu0 0.0
  %790 = vmatprep.subr.mxu0 0.0
  %791 = vmatpush1.msra.mxu0 0.0
  %792 = vmatprep.subr.mxu0 0.0
  %793 = vmatpush1.msra.mxu0 0.0
  %794 = vmatprep.subr.mxu0 0.0
  %795 = vmatpush1.msra.mxu0 0.0
  %796 = vmatprep.subr.mxu0 0.0
  %797 = vmatpush1.msra.mxu0 0.0
  %798 = vmatprep.subr.mxu0 0.0
  %799 = vmatpush1.msra.mxu0 0.0
  %800 = vmatprep.subr.mxu0 0.0
  %801 = vmatpush1.msra.mxu0 0.0
  %802 = vmatprep.subr.mxu0 0.0
  %803 = vmatpush1.msra.mxu0 0.0
  %804 = vmatprep.subr.mxu0 0.0
  %805 = vmatpush1.msra.mxu0 0.0
  %806 = vmatprep.subr.mxu0 0.0
  %807 = vmatpush1.msra.mxu0 0.0
  %808 = vmatprep.subr.mxu0 0.0
  %809 = vmatpush1.msra.mxu0 0.0
  %810 = vmatprep.subr.mxu0 0.0
  %811 = vmatpush1.msra.mxu0 0.0
  %812 = vmatprep.subr.mxu0 0.0
  %813 = vmatpush1.msra.mxu0 0.0
  %814 = vmatprep.subr.mxu0 0.0
  %815 = vmatpush1.msra.mxu0 0.0
  %816 = vmatprep.subr.mxu0 0.0
  %817 = vmatpush1.msra.mxu0 0.0
  %818 = vmatprep.subr.mxu0 0.0
  %819 = vmatpush1.msra.mxu0 0.0
  %820 = vmatprep.subr.mxu0 0.0
  %821 = vmatpush1.msra.mxu0 0.0
  %822 = vmatprep.subr.mxu0 0.0
  %823 = vmatpush1.msra.mxu0 0.0
  %824 = vmatprep.subr.mxu0 0.0
  %825 = vmatpush1.msra.mxu0 0.0
  %826 = vmatprep.subr.mxu0 0.0
  %827 = vmatpush1.msra.mxu0 0.0
  %828 = vmatprep.subr.mxu0 0.0
  %829 = vmatpush1.msra.mxu0 0.0
  %830 = vmatprep.subr.mxu0 0.0
  %831 = vmatpush1.msra.mxu0 0.0
  %832 = vmatprep.subr.mxu0 0.0
  %833 = vmatpush1.msra.mxu0 0.0
  %834 = vmatprep.mubr.f32.mxu0 0.0
  %835 = vmatmul.mubr.f32.gmra.mrb[0].mxu0 %v768
  %v836 = vpop.f32.mrb[0].mxu0
  %v837 = vadd.f32 0.0, %v836
  %v838 = vpop.f32.mrb[0].mxu0
  %839 = vdwg.mxu0
  %840 = vrot.lane.b32.xlu0 %v365, 64
  %v841 = vpop.permute.xlu0 %840
  %v844 = vsel %vm719, %v759, 0
  %846 = vmatprep.subr.mxu0 0.0
  %847 = vmatpush1.msra.mxu0 %v841
  %848 = vmatprep.subr.mxu0 0.0
  %849 = vmatpush1.msra.mxu0 0.0
  %850 = vmatprep.subr.mxu0 0.0
  %851 = vmatpush1.msra.mxu0 0.0
  %852 = vmatprep.subr.mxu0 0.0
  %853 = vmatpush1.msra.mxu0 0.0
  %854 = vmatprep.subr.mxu0 0.0
  %855 = vmatpush1.msra.mxu0 0.0
  %856 = vmatprep.subr.mxu0 0.0
  %857 = vmatpush1.msra.mxu0 0.0
  %858 = vmatprep.subr.mxu0 0.0
  %859 = vmatpush1.msra.mxu0 0.0
  %860 = vmatprep.subr.mxu0 0.0
  %861 = vmatpush1.msra.mxu0 0.0
  %862 = vmatprep.subr.mxu0 0.0
  %863 = vmatpush1.msra.mxu0 0.0
  %864 = vmatprep.subr.mxu0 0.0
  %865 = vmatpush1.msra.mxu0 0.0
  %866 = vmatprep.subr.mxu0 0.0
  %867 = vmatpush1.msra.mxu0 0.0
  %868 = vmatprep.subr.mxu0 0.0
  %869 = vmatpush1.msra.mxu0 0.0
  %870 = vmatprep.subr.mxu0 0.0
  %871 = vmatpush1.msra.mxu0 0.0
  %872 = vmatprep.subr.mxu0 0.0
  %873 = vmatpush1.msra.mxu0 0.0
  %874 = vmatprep.subr.mxu0 0.0
  %875 = vmatpush1.msra.mxu0 0.0
  %876 = vmatprep.subr.mxu0 0.0
  %877 = vmatpush1.msra.mxu0 0.0
  %878 = vmatprep.subr.mxu0 0.0
  %879 = vmatpush1.msra.mxu0 0.0
  %880 = vmatprep.subr.mxu0 0.0
  %881 = vmatpush1.msra.mxu0 0.0
  %882 = vmatprep.subr.mxu0 0.0
  %883 = vmatpush1.msra.mxu0 0.0
  %884 = vmatprep.subr.mxu0 0.0
  %885 = vmatpush1.msra.mxu0 0.0
  %886 = vmatprep.subr.mxu0 0.0
  %887 = vmatpush1.msra.mxu0 0.0
  %888 = vmatprep.subr.mxu0 0.0
  %889 = vmatpush1.msra.mxu0 0.0
  %890 = vmatprep.subr.mxu0 0.0
  %891 = vmatpush1.msra.mxu0 0.0
  %892 = vmatprep.subr.mxu0 0.0
  %893 = vmatpush1.msra.mxu0 0.0
  %894 = vmatprep.subr.mxu0 0.0
  %895 = vmatpush1.msra.mxu0 0.0
  %896 = vmatprep.subr.mxu0 0.0
  %897 = vmatpush1.msra.mxu0 0.0
  %898 = vmatprep.subr.mxu0 0.0
  %899 = vmatpush1.msra.mxu0 0.0
  %900 = vmatprep.subr.mxu0 0.0
  %901 = vmatpush1.msra.mxu0 0.0
  %902 = vmatprep.subr.mxu0 0.0
  %903 = vmatpush1.msra.mxu0 0.0
  %904 = vmatprep.subr.mxu0 0.0
  %905 = vmatpush1.msra.mxu0 0.0
  %906 = vmatprep.subr.mxu0 0.0
  %907 = vmatpush1.msra.mxu0 0.0
  %908 = vmatprep.subr.mxu0 0.0
  %909 = vmatpush1.msra.mxu0 0.0
  %910 = vmatprep.mubr.f32.mxu0 0.0
  %911 = vmatmul.mubr.f32.gmra.mrb[0].mxu0 %v844
  %v912 = vpop.f32.mrb[0].mxu0
  %v913 = vadd.f32 0.0, %v912
  %v914 = vpop.f32.mrb[0].mxu0
  %915 = vdwg.mxu0
  %916 = vrot.lane.b32.xlu0 %v370, 64
  %v917 = vpop.permute.xlu0 %916
  %v920 = vsel %vm719, %v761, 0
  %922 = vmatprep.subr.mxu0 0.0
  %923 = vmatpush1.msra.mxu0 %v917
  %924 = vmatprep.subr.mxu0 0.0
  %925 = vmatpush1.msra.mxu0 0.0
  %926 = vmatprep.subr.mxu0 0.0
  %927 = vmatpush1.msra.mxu0 0.0
  %928 = vmatprep.subr.mxu0 0.0
  %929 = vmatpush1.msra.mxu0 0.0
  %930 = vmatprep.subr.mxu0 0.0
  %931 = vmatpush1.msra.mxu0 0.0
  %932 = vmatprep.subr.mxu0 0.0
  %933 = vmatpush1.msra.mxu0 0.0
  %934 = vmatprep.subr.mxu0 0.0
  %935 = vmatpush1.msra.mxu0 0.0
  %936 = vmatprep.subr.mxu0 0.0
  %937 = vmatpush1.msra.mxu0 0.0
  %938 = vmatprep.subr.mxu0 0.0
  %939 = vmatpush1.msra.mxu0 0.0
  %940 = vmatprep.subr.mxu0 0.0
  %941 = vmatpush1.msra.mxu0 0.0
  %942 = vmatprep.subr.mxu0 0.0
  %943 = vmatpush1.msra.mxu0 0.0
  %944 = vmatprep.subr.mxu0 0.0
  %945 = vmatpush1.msra.mxu0 0.0
  %946 = vmatprep.subr.mxu0 0.0
  %947 = vmatpush1.msra.mxu0 0.0
  %948 = vmatprep.subr.mxu0 0.0
  %949 = vmatpush1.msra.mxu0 0.0
  %950 = vmatprep.subr.mxu0 0.0
  %951 = vmatpush1.msra.mxu0 0.0
  %952 = vmatprep.subr.mxu0 0.0
  %953 = vmatpush1.msra.mxu0 0.0
  %954 = vmatprep.subr.mxu0 0.0
  %955 = vmatpush1.msra.mxu0 0.0
  %956 = vmatprep.subr.mxu0 0.0
  %957 = vmatpush1.msra.mxu0 0.0
  %958 = vmatprep.subr.mxu0 0.0
  %959 = vmatpush1.msra.mxu0 0.0
  %960 = vmatprep.subr.mxu0 0.0
  %961 = vmatpush1.msra.mxu0 0.0
  %962 = vmatprep.subr.mxu0 0.0
  %963 = vmatpush1.msra.mxu0 0.0
  %964 = vmatprep.subr.mxu0 0.0
  %965 = vmatpush1.msra.mxu0 0.0
  %966 = vmatprep.subr.mxu0 0.0
  %967 = vmatpush1.msra.mxu0 0.0
  %968 = vmatprep.subr.mxu0 0.0
  %969 = vmatpush1.msra.mxu0 0.0
  %970 = vmatprep.subr.mxu0 0.0
  %971 = vmatpush1.msra.mxu0 0.0
  %972 = vmatprep.subr.mxu0 0.0
  %973 = vmatpush1.msra.mxu0 0.0
  %974 = vmatprep.subr.mxu0 0.0
  %975 = vmatpush1.msra.mxu0 0.0
  %976 = vmatprep.subr.mxu0 0.0
  %977 = vmatpush1.msra.mxu0 0.0
  %978 = vmatprep.subr.mxu0 0.0
  %979 = vmatpush1.msra.mxu0 0.0
  %980 = vmatprep.subr.mxu0 0.0
  %981 = vmatpush1.msra.mxu0 0.0
  %982 = vmatprep.subr.mxu0 0.0
  %983 = vmatpush1.msra.mxu0 0.0
  %984 = vmatprep.subr.mxu0 0.0
  %985 = vmatpush1.msra.mxu0 0.0
  %986 = vmatprep.mubr.f32.mxu0 0.0
  %987 = vmatmul.mubr.f32.gmra.mrb[0].mxu0 %v920
  %v988 = vpop.f32.mrb[0].mxu0
  %v989 = vadd.f32 0.0, %v988
  %v990 = vpop.f32.mrb[0].mxu0
  %991 = vdwg.mxu0
  %992 = vrot.lane.b32.xlu0 %v375, 64
  %v993 = vpop.permute.xlu0 %992
  %v996 = vsel %vm719, %v763, 0
  %998 = vmatprep.subr.mxu0 0.0
  %999 = vmatpush1.msra.mxu0 %v993
  %1000 = vmatprep.subr.mxu0 0.0
  %1001 = vmatpush1.msra.mxu0 0.0
  %1002 = vmatprep.subr.mxu0 0.0
  %1003 = vmatpush1.msra.mxu0 0.0
  %1004 = vmatprep.subr.mxu0 0.0
  %1005 = vmatpush1.msra.mxu0 0.0
  %1006 = vmatprep.subr.mxu0 0.0
  %1007 = vmatpush1.msra.mxu0 0.0
  %1008 = vmatprep.subr.mxu0 0.0
  %1009 = vmatpush1.msra.mxu0 0.0
  %1010 = vmatprep.subr.mxu0 0.0
  %1011 = vmatpush1.msra.mxu0 0.0
  %1012 = vmatprep.subr.mxu0 0.0
  %1013 = vmatpush1.msra.mxu0 0.0
  %1014 = vmatprep.subr.mxu0 0.0
  %1015 = vmatpush1.msra.mxu0 0.0
  %1016 = vmatprep.subr.mxu0 0.0
  %1017 = vmatpush1.msra.mxu0 0.0
  %1018 = vmatprep.subr.mxu0 0.0
  %1019 = vmatpush1.msra.mxu0 0.0
  %1020 = vmatprep.subr.mxu0 0.0
  %1021 = vmatpush1.msra.mxu0 0.0
  %1022 = vmatprep.subr.mxu0 0.0
  %1023 = vmatpush1.msra.mxu0 0.0
  %1024 = vmatprep.subr.mxu0 0.0
  %1025 = vmatpush1.msra.mxu0 0.0
  %1026 = vmatprep.subr.mxu0 0.0
  %1027 = vmatpush1.msra.mxu0 0.0
  %1028 = vmatprep.subr.mxu0 0.0
  %1029 = vmatpush1.msra.mxu0 0.0
  %1030 = vmatprep.subr.mxu0 0.0
  %1031 = vmatpush1.msra.mxu0 0.0
  %1032 = vmatprep.subr.mxu0 0.0
  %1033 = vmatpush1.msra.mxu0 0.0
  %1034 = vmatprep.subr.mxu0 0.0
  %1035 = vmatpush1.msra.mxu0 0.0
  %1036 = vmatprep.subr.mxu0 0.0
  %1037 = vmatpush1.msra.mxu0 0.0
  %1038 = vmatprep.subr.mxu0 0.0
  %1039 = vmatpush1.msra.mxu0 0.0
  %1040 = vmatprep.subr.mxu0 0.0
  %1041 = vmatpush1.msra.mxu0 0.0
  %1042 = vmatprep.subr.mxu0 0.0
  %1043 = vmatpush1.msra.mxu0 0.0
  %1044 = vmatprep.subr.mxu0 0.0
  %1045 = vmatpush1.msra.mxu0 0.0
  %1046 = vmatprep.subr.mxu0 0.0
  %1047 = vmatpush1.msra.mxu0 0.0
  %1048 = vmatprep.subr.mxu0 0.0
  %1049 = vmatpush1.msra.mxu0 0.0
  %1050 = vmatprep.subr.mxu0 0.0
  %1051 = vmatpush1.msra.mxu0 0.0
  %1052 = vmatprep.subr.mxu0 0.0
  %1053 = vmatpush1.msra.mxu0 0.0
  %1054 = vmatprep.subr.mxu0 0.0
  %1055 = vmatpush1.msra.mxu0 0.0
  %1056 = vmatprep.subr.mxu0 0.0
  %1057 = vmatpush1.msra.mxu0 0.0
  %1058 = vmatprep.subr.mxu0 0.0
  %1059 = vmatpush1.msra.mxu0 0.0
  %1060 = vmatprep.subr.mxu0 0.0
  %1061 = vmatpush1.msra.mxu0 0.0
  %1062 = vmatprep.mubr.f32.mxu0 0.0
  %1063 = vmatmul.mubr.f32.gmra.mrb[0].mxu0 %v996
  %v1064 = vpop.f32.mrb[0].mxu0
  %v1065 = vadd.f32 0.0, %v1064
  %v1066 = vpop.f32.mrb[0].mxu0
  %1067 = vdwg.mxu0
  %1068 = vrot.lane.b32.xlu0 %v360, 112
  %v1069 = vpop.permute.xlu0 %1068
  %1070 = vrot.lane.b32.xlu0 %v360, 80
  %v1071 = vpop.permute.xlu0 %1070
  %v1072 = vsel %vm381, %v1069, 0
  %v1074 = vsel %vm381, %v1071, 0
  %1076 = vmatprep.subr.mxu0 0.0
  %1077 = vmatpush1.xpose.msra.mxu0 %v1074
  %1078 = vmatprep.subr.mxu0 0.0
  %1079 = vmatpush1.xpose.msra.mxu0 0.0
  %1080 = vmatprep.subr.mxu0 0.0
  %1081 = vmatpush1.xpose.msra.mxu0 0.0
  %1082 = vmatprep.subr.mxu0 0.0
  %1083 = vmatpush1.xpose.msra.mxu0 0.0
  %1084 = vmatprep.subr.mxu0 0.0
  %1085 = vmatpush1.xpose.msra.mxu0 0.0
  %1086 = vmatprep.subr.mxu0 0.0
  %1087 = vmatpush1.xpose.msra.mxu0 0.0
  %1088 = vmatprep.subr.mxu0 0.0
  %1089 = vmatpush1.xpose.msra.mxu0 0.0
  %1090 = vmatprep.subr.mxu0 0.0
  %1091 = vmatpush1.xpose.msra.mxu0 0.0
  %1092 = vmatprep.subr.mxu0 0.0
  %1093 = vmatpush1.xpose.msra.mxu0 0.0
  %1094 = vmatprep.subr.mxu0 0.0
  %1095 = vmatpush1.xpose.msra.mxu0 0.0
  %1096 = vmatprep.subr.mxu0 0.0
  %1097 = vmatpush1.xpose.msra.mxu0 0.0
  %1098 = vmatprep.subr.mxu0 0.0
  %1099 = vmatpush1.xpose.msra.mxu0 0.0
  %1100 = vmatprep.subr.mxu0 0.0
  %1101 = vmatpush1.xpose.msra.mxu0 0.0
  %1102 = vmatprep.subr.mxu0 0.0
  %1103 = vmatpush1.xpose.msra.mxu0 0.0
  %1104 = vmatprep.subr.mxu0 0.0
  %1105 = vmatpush1.xpose.msra.mxu0 0.0
  %1106 = vmatprep.subr.mxu0 0.0
  %1107 = vmatpush1.xpose.msra.mxu0 0.0
  %1108 = vmatprep.subr.mxu0 0.0
  %1109 = vmatpush1.xpose.msra.mxu0 0.0
  %1110 = vmatprep.subr.mxu0 0.0
  %1111 = vmatpush1.xpose.msra.mxu0 0.0
  %1112 = vmatprep.subr.mxu0 0.0
  %1113 = vmatpush1.xpose.msra.mxu0 0.0
  %1114 = vmatprep.subr.mxu0 0.0
  %1115 = vmatpush1.xpose.msra.mxu0 0.0
  %1116 = vmatprep.subr.mxu0 0.0
  %1117 = vmatpush1.xpose.msra.mxu0 0.0
  %1118 = vmatprep.subr.mxu0 0.0
  %1119 = vmatpush1.xpose.msra.mxu0 0.0
  %1120 = vmatprep.subr.mxu0 0.0
  %1121 = vmatpush1.xpose.msra.mxu0 0.0
  %1122 = vmatprep.subr.mxu0 0.0
  %1123 = vmatpush1.xpose.msra.mxu0 0.0
  %1124 = vmatprep.subr.mxu0 0.0
  %1125 = vmatpush1.xpose.msra.mxu0 0.0
  %1126 = vmatprep.subr.mxu0 0.0
  %1127 = vmatpush1.xpose.msra.mxu0 0.0
  %1128 = vmatprep.subr.mxu0 0.0
  %1129 = vmatpush1.xpose.msra.mxu0 0.0
  %1130 = vmatprep.subr.mxu0 0.0
  %1131 = vmatpush1.xpose.msra.mxu0 0.0
  %1132 = vmatprep.subr.mxu0 0.0
  %1133 = vmatpush1.xpose.msra.mxu0 0.0
  %1134 = vmatprep.subr.mxu0 0.0
  %1135 = vmatpush1.xpose.msra.mxu0 0.0
  %1136 = vmatprep.subr.mxu0 0.0
  %1137 = vmatpush1.xpose.msra.mxu0 0.0
  %1138 = vmatprep.subr.mxu0 0.0
  %1139 = vmatpush1.xpose.msra.mxu0 0.0
  %1140 = vmatprep.mubr.f32.mxu0 0.0
  %1141 = vmatmul.mubr.f32.gmra.mrb[0].mxu0 %v1072
  %v1142 = vpop.f32.mrb[0].mxu0
  %v1143 = vadd.f32 0.0, %v1142
  %v1144 = vpop.f32.mrb[0].mxu0
  %1145 = vdwg.mxu0
  %1146 = vrot.lane.b32.xlu0 %v365, 112
  %v1147 = vpop.permute.xlu0 %1146
  %1148 = vrot.lane.b32.xlu0 %v365, 80
  %v1149 = vpop.permute.xlu0 %1148
  %v1150 = vsel %vm381, %v1147, 0
  %v1152 = vsel %vm381, %v1149, 0
  %1154 = vmatprep.subr.mxu0 0.0
  %1155 = vmatpush1.xpose.msra.mxu0 %v1152
  %1156 = vmatprep.subr.mxu0 0.0
  %1157 = vmatpush1.xpose.msra.mxu0 0.0
  %1158 = vmatprep.subr.mxu0 0.0
  %1159 = vmatpush1.xpose.msra.mxu0 0.0
  %1160 = vmatprep.subr.mxu0 0.0
  %1161 = vmatpush1.xpose.msra.mxu0 0.0
  %1162 = vmatprep.subr.mxu0 0.0
  %1163 = vmatpush1.xpose.msra.mxu0 0.0
  %1164 = vmatprep.subr.mxu0 0.0
  %1165 = vmatpush1.xpose.msra.mxu0 0.0
  %1166 = vmatprep.subr.mxu0 0.0
  %1167 = vmatpush1.xpose.msra.mxu0 0.0
  %1168 = vmatprep.subr.mxu0 0.0
  %1169 = vmatpush1.xpose.msra.mxu0 0.0
  %1170 = vmatprep.subr.mxu0 0.0
  %1171 = vmatpush1.xpose.msra.mxu0 0.0
  %1172 = vmatprep.subr.mxu0 0.0
  %1173 = vmatpush1.xpose.msra.mxu0 0.0
  %1174 = vmatprep.subr.mxu0 0.0
  %1175 = vmatpush1.xpose.msra.mxu0 0.0
  %1176 = vmatprep.subr.mxu0 0.0
  %1177 = vmatpush1.xpose.msra.mxu0 0.0
  %1178 = vmatprep.subr.mxu0 0.0
  %1179 = vmatpush1.xpose.msra.mxu0 0.0
  %1180 = vmatprep.subr.mxu0 0.0
  %1181 = vmatpush1.xpose.msra.mxu0 0.0
  %1182 = vmatprep.subr.mxu0 0.0
  %1183 = vmatpush1.xpose.msra.mxu0 0.0
  %1184 = vmatprep.subr.mxu0 0.0
  %1185 = vmatpush1.xpose.msra.mxu0 0.0
  %1186 = vmatprep.subr.mxu0 0.0
  %1187 = vmatpush1.xpose.msra.mxu0 0.0
  %1188 = vmatprep.subr.mxu0 0.0
  %1189 = vmatpush1.xpose.msra.mxu0 0.0
  %1190 = vmatprep.subr.mxu0 0.0
  %1191 = vmatpush1.xpose.msra.mxu0 0.0
  %1192 = vmatprep.subr.mxu0 0.0
  %1193 = vmatpush1.xpose.msra.mxu0 0.0
  %1194 = vmatprep.subr.mxu0 0.0
  %1195 = vmatpush1.xpose.msra.mxu0 0.0
  %1196 = vmatprep.subr.mxu0 0.0
  %1197 = vmatpush1.xpose.msra.mxu0 0.0
  %1198 = vmatprep.subr.mxu0 0.0
  %1199 = vmatpush1.xpose.msra.mxu0 0.0
  %1200 = vmatprep.subr.mxu0 0.0
  %1201 = vmatpush1.xpose.msra.mxu0 0.0
  %1202 = vmatprep.subr.mxu0 0.0
  %1203 = vmatpush1.xpose.msra.mxu0 0.0
  %1204 = vmatprep.subr.mxu0 0.0
  %1205 = vmatpush1.xpose.msra.mxu0 0.0
  %1206 = vmatprep.subr.mxu0 0.0
  %1207 = vmatpush1.xpose.msra.mxu0 0.0
  %1208 = vmatprep.subr.mxu0 0.0
  %1209 = vmatpush1.xpose.msra.mxu0 0.0
  %1210 = vmatprep.subr.mxu0 0.0
  %1211 = vmatpush1.xpose.msra.mxu0 0.0
  %1212 = vmatprep.subr.mxu0 0.0
  %1213 = vmatpush1.xpose.msra.mxu0 0.0
  %1214 = vmatprep.subr.mxu0 0.0
  %1215 = vmatpush1.xpose.msra.mxu0 0.0
  %1216 = vmatprep.subr.mxu0 0.0
  %1217 = vmatpush1.xpose.msra.mxu0 0.0
  %1218 = vmatprep.mubr.f32.mxu0 0.0
  %1219 = vmatmul.mubr.f32.gmra.mrb[0].mxu0 %v1150
  %v1220 = vpop.f32.mrb[0].mxu0
  %v1221 = vadd.f32 0.0, %v1220
  %v1222 = vpop.f32.mrb[0].mxu0
  %1223 = vdwg.mxu0
  %1224 = vrot.lane.b32.xlu0 %v370, 112
  %v1225 = vpop.permute.xlu0 %1224
  %1226 = vrot.lane.b32.xlu0 %v370, 80
  %v1227 = vpop.permute.xlu0 %1226
  %v1228 = vsel %vm381, %v1225, 0
  %v1230 = vsel %vm381, %v1227, 0
  %1232 = vmatprep.subr.mxu0 0.0
  %1233 = vmatpush1.xpose.msra.mxu0 %v1230
  %1234 = vmatprep.subr.mxu0 0.0
  %1235 = vmatpush1.xpose.msra.mxu0 0.0
  %1236 = vmatprep.subr.mxu0 0.0
  %1237 = vmatpush1.xpose.msra.mxu0 0.0
  %1238 = vmatprep.subr.mxu0 0.0
  %1239 = vmatpush1.xpose.msra.mxu0 0.0
  %1240 = vmatprep.subr.mxu0 0.0
  %1241 = vmatpush1.xpose.msra.mxu0 0.0
  %1242 = vmatprep.subr.mxu0 0.0
  %1243 = vmatpush1.xpose.msra.mxu0 0.0
  %1244 = vmatprep.subr.mxu0 0.0
  %1245 = vmatpush1.xpose.msra.mxu0 0.0
  %1246 = vmatprep.subr.mxu0 0.0
  %1247 = vmatpush1.xpose.msra.mxu0 0.0
  %1248 = vmatprep.subr.mxu0 0.0
  %1249 = vmatpush1.xpose.msra.mxu0 0.0
  %1250 = vmatprep.subr.mxu0 0.0
  %1251 = vmatpush1.xpose.msra.mxu0 0.0
  %1252 = vmatprep.subr.mxu0 0.0
  %1253 = vmatpush1.xpose.msra.mxu0 0.0
  %1254 = vmatprep.subr.mxu0 0.0
  %1255 = vmatpush1.xpose.msra.mxu0 0.0
  %1256 = vmatprep.subr.mxu0 0.0
  %1257 = vmatpush1.xpose.msra.mxu0 0.0
  %1258 = vmatprep.subr.mxu0 0.0
  %1259 = vmatpush1.xpose.msra.mxu0 0.0
  %1260 = vmatprep.subr.mxu0 0.0
  %1261 = vmatpush1.xpose.msra.mxu0 0.0
  %1262 = vmatprep.subr.mxu0 0.0
  %1263 = vmatpush1.xpose.msra.mxu0 0.0
  %1264 = vmatprep.subr.mxu0 0.0
  %1265 = vmatpush1.xpose.msra.mxu0 0.0
  %1266 = vmatprep.subr.mxu0 0.0
  %1267 = vmatpush1.xpose.msra.mxu0 0.0
  %1268 = vmatprep.subr.mxu0 0.0
  %1269 = vmatpush1.xpose.msra.mxu0 0.0
  %1270 = vmatprep.subr.mxu0 0.0
  %1271 = vmatpush1.xpose.msra.mxu0 0.0
  %1272 = vmatprep.subr.mxu0 0.0
  %1273 = vmatpush1.xpose.msra.mxu0 0.0
  %1274 = vmatprep.subr.mxu0 0.0
  %1275 = vmatpush1.xpose.msra.mxu0 0.0
  %1276 = vmatprep.subr.mxu0 0.0
  %1277 = vmatpush1.xpose.msra.mxu0 0.0
  %1278 = vmatprep.subr.mxu0 0.0
  %1279 = vmatpush1.xpose.msra.mxu0 0.0
  %1280 = vmatprep.subr.mxu0 0.0
  %1281 = vmatpush1.xpose.msra.mxu0 0.0
  %1282 = vmatprep.subr.mxu0 0.0
  %1283 = vmatpush1.xpose.msra.mxu0 0.0
  %1284 = vmatprep.subr.mxu0 0.0
  %1285 = vmatpush1.xpose.msra.mxu0 0.0
  %1286 = vmatprep.subr.mxu0 0.0
  %1287 = vmatpush1.xpose.msra.mxu0 0.0
  %1288 = vmatprep.subr.mxu0 0.0
  %1289 = vmatpush1.xpose.msra.mxu0 0.0
  %1290 = vmatprep.subr.mxu0 0.0
  %1291 = vmatpush1.xpose.msra.mxu0 0.0
  %1292 = vmatprep.subr.mxu0 0.0
  %1293 = vmatpush1.xpose.msra.mxu0 0.0
  %1294 = vmatprep.subr.mxu0 0.0
  %1295 = vmatpush1.xpose.msra.mxu0 0.0
  %1296 = vmatprep.mubr.f32.mxu0 0.0
  %1297 = vmatmul.mubr.f32.gmra.mrb[0].mxu0 %v1228
  %v1298 = vpop.f32.mrb[0].mxu0
  %v1299 = vadd.f32 0.0, %v1298
  %v1300 = vpop.f32.mrb[0].mxu0
  %1301 = vdwg.mxu0
  %1302 = vrot.lane.b32.xlu0 %v375, 112
  %v1303 = vpop.permute.xlu0 %1302
  %1304 = vrot.lane.b32.xlu0 %v375, 80
  %v1305 = vpop.permute.xlu0 %1304
  %v1306 = vsel %vm381, %v1303, 0
  %v1308 = vsel %vm381, %v1305, 0
  %1310 = vmatprep.subr.mxu0 0.0
  %1311 = vmatpush1.xpose.msra.mxu0 %v1308
  %1312 = vmatprep.subr.mxu0 0.0
  %1313 = vmatpush1.xpose.msra.mxu0 0.0
  %1314 = vmatprep.subr.mxu0 0.0
  %1315 = vmatpush1.xpose.msra.mxu0 0.0
  %1316 = vmatprep.subr.mxu0 0.0
  %1317 = vmatpush1.xpose.msra.mxu0 0.0
  %1318 = vmatprep.subr.mxu0 0.0
  %1319 = vmatpush1.xpose.msra.mxu0 0.0
  %1320 = vmatprep.subr.mxu0 0.0
  %1321 = vmatpush1.xpose.msra.mxu0 0.0
  %1322 = vmatprep.subr.mxu0 0.0
  %1323 = vmatpush1.xpose.msra.mxu0 0.0
  %1324 = vmatprep.subr.mxu0 0.0
  %1325 = vmatpush1.xpose.msra.mxu0 0.0
  %1326 = vmatprep.subr.mxu0 0.0
  %1327 = vmatpush1.xpose.msra.mxu0 0.0
  %1328 = vmatprep.subr.mxu0 0.0
  %1329 = vmatpush1.xpose.msra.mxu0 0.0
  %1330 = vmatprep.subr.mxu0 0.0
  %1331 = vmatpush1.xpose.msra.mxu0 0.0
  %1332 = vmatprep.subr.mxu0 0.0
  %1333 = vmatpush1.xpose.msra.mxu0 0.0
  %1334 = vmatprep.subr.mxu0 0.0
  %1335 = vmatpush1.xpose.msra.mxu0 0.0
  %1336 = vmatprep.subr.mxu0 0.0
  %1337 = vmatpush1.xpose.msra.mxu0 0.0
  %1338 = vmatprep.subr.mxu0 0.0
  %1339 = vmatpush1.xpose.msra.mxu0 0.0
  %1340 = vmatprep.subr.mxu0 0.0
  %1341 = vmatpush1.xpose.msra.mxu0 0.0
  %1342 = vmatprep.subr.mxu0 0.0
  %1343 = vmatpush1.xpose.msra.mxu0 0.0
  %1344 = vmatprep.subr.mxu0 0.0
  %1345 = vmatpush1.xpose.msra.mxu0 0.0
  %1346 = vmatprep.subr.mxu0 0.0
  %1347 = vmatpush1.xpose.msra.mxu0 0.0
  %1348 = vmatprep.subr.mxu0 0.0
  %1349 = vmatpush1.xpose.msra.mxu0 0.0
  %1350 = vmatprep.subr.mxu0 0.0
  %1351 = vmatpush1.xpose.msra.mxu0 0.0
  %1352 = vmatprep.subr.mxu0 0.0
  %1353 = vmatpush1.xpose.msra.mxu0 0.0
  %1354 = vmatprep.subr.mxu0 0.0
  %1355 = vmatpush1.xpose.msra.mxu0 0.0
  %1356 = vmatprep.subr.mxu0 0.0
  %1357 = vmatpush1.xpose.msra.mxu0 0.0
  %1358 = vmatprep.subr.mxu0 0.0
  %1359 = vmatpush1.xpose.msra.mxu0 0.0
  %1360 = vmatprep.subr.mxu0 0.0
  %1361 = vmatpush1.xpose.msra.mxu0 0.0
  %1362 = vmatprep.subr.mxu0 0.0
  %1363 = vmatpush1.xpose.msra.mxu0 0.0
  %1364 = vmatprep.subr.mxu0 0.0
  %1365 = vmatpush1.xpose.msra.mxu0 0.0
  %1366 = vmatprep.subr.mxu0 0.0
  %1367 = vmatpush1.xpose.msra.mxu0 0.0
  %1368 = vmatprep.subr.mxu0 0.0
  %1369 = vmatpush1.xpose.msra.mxu0 0.0
  %1370 = vmatprep.subr.mxu0 0.0
  %1371 = vmatpush1.xpose.msra.mxu0 0.0
  %1372 = vmatprep.subr.mxu0 0.0
  %1373 = vmatpush1.xpose.msra.mxu0 0.0
  %1374 = vmatprep.mubr.f32.mxu0 0.0
  %1375 = vmatmul.mubr.f32.gmra.mrb[0].mxu0 %v1306
  %v1376 = vpop.f32.mrb[0].mxu0
  %v1377 = vadd.f32 0.0, %v1376
  %v1378 = vpop.f32.mrb[0].mxu0
  %1379 = vdwg.mxu0
  %v1380 = vmul.f32 %v1143, 0.25
  %v1381 = vmul.f32 %v1221, 0.25
  %v1382 = vmul.f32 %v1299, 0.25
  %v1383 = vmul.f32 %v1377, 0.25
  %v1384 = vadd.f32 %v1380, %v698
  %v1385 = vadd.f32 %v1381, %v702
  %v1386 = vadd.f32 %v1382, %v706
  %v1387 = vadd.f32 %v1383, %v710
  %v1388 = vsel %vm719, %v1384, -inf
  %1389 = vmax.xlane.f32.xlu0 %v1388
  %v1390 = vpop.xlane.xlu0 %1389
  %v1391 = vsel %vm719, %v1385, -inf
  %1392 = vmax.xlane.f32.xlu0 %v1391
  %v1393 = vpop.xlane.xlu0 %1392
  %v1394 = vsel %vm719, %v1386, -inf
  %1395 = vmax.xlane.f32.xlu0 %v1394
  %v1396 = vpop.xlane.xlu0 %1395
  %v1397 = vsel %vm719, %v1387, -inf
  %1398 = vmax.xlane.f32.xlu0 %v1397
  %v1399 = vpop.xlane.xlu0 %1398
  %v1400 = vsub.f32 %v1384, %v1390
  %v1401 = vsub.f32 %v1385, %v1393
  %v1402 = vsub.f32 %v1386, %v1396
  %v1403 = vsub.f32 %v1387, %v1399
  %v1404 = vmul.f32 %v1400, 1.442695
  %v1405 = vpow.pop %v1404
  %v1406 = vmul.f32 %v1401, 1.442695
  %v1407 = vpow.pop %v1406
  %v1408 = vmul.f32 %v1402, 1.442695
  %v1409 = vpow.pop %v1408
  %v1410 = vmul.f32 %v1403, 1.442695
  %v1411 = vpow.pop %v1410
  %v1412 = vsel %vm719, %v1405, 0.0
  %1413 = vadd.xlane.f32.xlu0 %v1412
  %v1414 = vpop.xlane.xlu0 %1413
  %v1415 = vsel %vm719, %v1407, 0.0
  %1416 = vadd.xlane.f32.xlu0 %v1415
  %v1417 = vpop.xlane.xlu0 %1416
  %v1418 = vsel %vm719, %v1409, 0.0
  %1419 = vadd.xlane.f32.xlu0 %v1418
  %v1420 = vpop.xlane.xlu0 %1419
  %v1421 = vsel %vm719, %v1411, 0.0
  %1422 = vadd.xlane.f32.xlu0 %v1421
  %v1423 = vpop.xlane.xlu0 %1422
  %v1424 = vrcp.pop %v1414
  %v1425 = vmul.f32 %v1405, %v1424
  %v1426 = vrcp.pop %v1417
  %v1427 = vmul.f32 %v1407, %v1426
  %v1428 = vrcp.pop %v1420
  %v1429 = vmul.f32 %v1409, %v1428
  %v1430 = vrcp.pop %v1423
  %v1431 = vmul.f32 %v1411, %v1430
  %1432 = vrot.lane.b32.xlu0 %v360, 48
  %v1433 = vpop.permute.xlu0 %1432
  %v1436 = vsel %vm719, %v1425, 0
  %1438 = vmatprep.subr.mxu0 0.0
  %1439 = vmatpush1.msra.mxu0 %v1433
  %1440 = vmatprep.subr.mxu0 0.0
  %1441 = vmatpush1.msra.mxu0 0.0
  %1442 = vmatprep.subr.mxu0 0.0
  %1443 = vmatpush1.msra.mxu0 0.0
  %1444 = vmatprep.subr.mxu0 0.0
  %1445 = vmatpush1.msra.mxu0 0.0
  %1446 = vmatprep.subr.mxu0 0.0
  %1447 = vmatpush1.msra.mxu0 0.0
  %1448 = vmatprep.subr.mxu0 0.0
  %1449 = vmatpush1.msra.mxu0 0.0
  %1450 = vmatprep.subr.mxu0 0.0
  %1451 = vmatpush1.msra.mxu0 0.0
  %1452 = vmatprep.subr.mxu0 0.0
  %1453 = vmatpush1.msra.mxu0 0.0
  %1454 = vmatprep.subr.mxu0 0.0
  %1455 = vmatpush1.msra.mxu0 0.0
  %1456 = vmatprep.subr.mxu0 0.0
  %1457 = vmatpush1.msra.mxu0 0.0
  %1458 = vmatprep.subr.mxu0 0.0
  %1459 = vmatpush1.msra.mxu0 0.0
  %1460 = vmatprep.subr.mxu0 0.0
  %1461 = vmatpush1.msra.mxu0 0.0
  %1462 = vmatprep.subr.mxu0 0.0
  %1463 = vmatpush1.msra.mxu0 0.0
  %1464 = vmatprep.subr.mxu0 0.0
  %1465 = vmatpush1.msra.mxu0 0.0
  %1466 = vmatprep.subr.mxu0 0.0
  %1467 = vmatpush1.msra.mxu0 0.0
  %1468 = vmatprep.subr.mxu0 0.0
  %1469 = vmatpush1.msra.mxu0 0.0
  %1470 = vmatprep.subr.mxu0 0.0
  %1471 = vmatpush1.msra.mxu0 0.0
  %1472 = vmatprep.subr.mxu0 0.0
  %1473 = vmatpush1.msra.mxu0 0.0
  %1474 = vmatprep.subr.mxu0 0.0
  %1475 = vmatpush1.msra.mxu0 0.0
  %1476 = vmatprep.subr.mxu0 0.0
  %1477 = vmatpush1.msra.mxu0 0.0
  %1478 = vmatprep.subr.mxu0 0.0
  %1479 = vmatpush1.msra.mxu0 0.0
  %1480 = vmatprep.subr.mxu0 0.0
  %1481 = vmatpush1.msra.mxu0 0.0
  %1482 = vmatprep.subr.mxu0 0.0
  %1483 = vmatpush1.msra.mxu0 0.0
  %1484 = vmatprep.subr.mxu0 0.0
  %1485 = vmatpush1.msra.mxu0 0.0
  %1486 = vmatprep.subr.mxu0 0.0
  %1487 = vmatpush1.msra.mxu0 0.0
  %1488 = vmatprep.subr.mxu0 0.0
  %1489 = vmatpush1.msra.mxu0 0.0
  %1490 = vmatprep.subr.mxu0 0.0
  %1491 = vmatpush1.msra.mxu0 0.0
  %1492 = vmatprep.subr.mxu0 0.0
  %1493 = vmatpush1.msra.mxu0 0.0
  %1494 = vmatprep.subr.mxu0 0.0
  %1495 = vmatpush1.msra.mxu0 0.0
  %1496 = vmatprep.subr.mxu0 0.0
  %1497 = vmatpush1.msra.mxu0 0.0
  %1498 = vmatprep.subr.mxu0 0.0
  %1499 = vmatpush1.msra.mxu0 0.0
  %1500 = vmatprep.subr.mxu0 0.0
  %1501 = vmatpush1.msra.mxu0 0.0
  %1502 = vmatprep.mubr.f32.mxu0 0.0
  %1503 = vmatmul.mubr.f32.gmra.mrb[0].mxu0 %v1436
  %v1504 = vpop.f32.mrb[0].mxu0
  %v1505 = vadd.f32 0.0, %v1504
  %v1506 = vpop.f32.mrb[0].mxu0
  %1507 = vdwg.mxu0
  %1508 = vrot.lane.b32.xlu0 %v365, 48
  %v1509 = vpop.permute.xlu0 %1508
  %v1512 = vsel %vm719, %v1427, 0
  %1514 = vmatprep.subr.mxu0 0.0
  %1515 = vmatpush1.msra.mxu0 %v1509
  %1516 = vmatprep.subr.mxu0 0.0
  %1517 = vmatpush1.msra.mxu0 0.0
  %1518 = vmatprep.subr.mxu0 0.0
  %1519 = vmatpush1.msra.mxu0 0.0
  %1520 = vmatprep.subr.mxu0 0.0
  %1521 = vmatpush1.msra.mxu0 0.0
  %1522 = vmatprep.subr.mxu0 0.0
  %1523 = vmatpush1.msra.mxu0 0.0
  %1524 = vmatprep.subr.mxu0 0.0
  %1525 = vmatpush1.msra.mxu0 0.0
  %1526 = vmatprep.subr.mxu0 0.0
  %1527 = vmatpush1.msra.mxu0 0.0
  %1528 = vmatprep.subr.mxu0 0.0
  %1529 = vmatpush1.msra.mxu0 0.0
  %1530 = vmatprep.subr.mxu0 0.0
  %1531 = vmatpush1.msra.mxu0 0.0
  %1532 = vmatprep.subr.mxu0 0.0
  %1533 = vmatpush1.msra.mxu0 0.0
  %1534 = vmatprep.subr.mxu0 0.0
  %1535 = vmatpush1.msra.mxu0 0.0
  %1536 = vmatprep.subr.mxu0 0.0
  %1537 = vmatpush1.msra.mxu0 0.0
  %1538 = vmatprep.subr.mxu0 0.0
  %1539 = vmatpush1.msra.mxu0 0.0
  %1540 = vmatprep.subr.mxu0 0.0
  %1541 = vmatpush1.msra.mxu0 0.0
  %1542 = vmatprep.subr.mxu0 0.0
  %1543 = vmatpush1.msra.mxu0 0.0
  %1544 = vmatprep.subr.mxu0 0.0
  %1545 = vmatpush1.msra.mxu0 0.0
  %1546 = vmatprep.subr.mxu0 0.0
  %1547 = vmatpush1.msra.mxu0 0.0
  %1548 = vmatprep.subr.mxu0 0.0
  %1549 = vmatpush1.msra.mxu0 0.0
  %1550 = vmatprep.subr.mxu0 0.0
  %1551 = vmatpush1.msra.mxu0 0.0
  %1552 = vmatprep.subr.mxu0 0.0
  %1553 = vmatpush1.msra.mxu0 0.0
  %1554 = vmatprep.subr.mxu0 0.0
  %1555 = vmatpush1.msra.mxu0 0.0
  %1556 = vmatprep.subr.mxu0 0.0
  %1557 = vmatpush1.msra.mxu0 0.0
  %1558 = vmatprep.subr.mxu0 0.0
  %1559 = vmatpush1.msra.mxu0 0.0
  %1560 = vmatprep.subr.mxu0 0.0
  %1561 = vmatpush1.msra.mxu0 0.0
  %1562 = vmatprep.subr.mxu0 0.0
  %1563 = vmatpush1.msra.mxu0 0.0
  %1564 = vmatprep.subr.mxu0 0.0
  %1565 = vmatpush1.msra.mxu0 0.0
  %1566 = vmatprep.subr.mxu0 0.0
  %1567 = vmatpush1.msra.mxu0 0.0
  %1568 = vmatprep.subr.mxu0 0.0
  %1569 = vmatpush1.msra.mxu0 0.0
  %1570 = vmatprep.subr.mxu0 0.0
  %1571 = vmatpush1.msra.mxu0 0.0
  %1572 = vmatprep.subr.mxu0 0.0
  %1573 = vmatpush1.msra.mxu0 0.0
  %1574 = vmatprep.subr.mxu0 0.0
  %1575 = vmatpush1.msra.mxu0 0.0
  %1576 = vmatprep.subr.mxu0 0.0
  %1577 = vmatpush1.msra.mxu0 0.0
  %1578 = vmatprep.mubr.f32.mxu0 0.0
  %1579 = vmatmul.mubr.f32.gmra.mrb[0].mxu0 %v1512
  %v1580 = vpop.f32.mrb[0].mxu0
  %v1581 = vadd.f32 0.0, %v1580
  %v1582 = vpop.f32.mrb[0].mxu0
  %1583 = vdwg.mxu0
  %1584 = vrot.lane.b32.xlu0 %v370, 48
  %v1585 = vpop.permute.xlu0 %1584
  %v1588 = vsel %vm719, %v1429, 0
  %1590 = vmatprep.subr.mxu0 0.0
  %1591 = vmatpush1.msra.mxu0 %v1585
  %1592 = vmatprep.subr.mxu0 0.0
  %1593 = vmatpush1.msra.mxu0 0.0
  %1594 = vmatprep.subr.mxu0 0.0
  %1595 = vmatpush1.msra.mxu0 0.0
  %1596 = vmatprep.subr.mxu0 0.0
  %1597 = vmatpush1.msra.mxu0 0.0
  %1598 = vmatprep.subr.mxu0 0.0
  %1599 = vmatpush1.msra.mxu0 0.0
  %1600 = vmatprep.subr.mxu0 0.0
  %1601 = vmatpush1.msra.mxu0 0.0
  %1602 = vmatprep.subr.mxu0 0.0
  %1603 = vmatpush1.msra.mxu0 0.0
  %1604 = vmatprep.subr.mxu0 0.0
  %1605 = vmatpush1.msra.mxu0 0.0
  %1606 = vmatprep.subr.mxu0 0.0
  %1607 = vmatpush1.msra.mxu0 0.0
  %1608 = vmatprep.subr.mxu0 0.0
  %1609 = vmatpush1.msra.mxu0 0.0
  %1610 = vmatprep.subr.mxu0 0.0
  %1611 = vmatpush1.msra.mxu0 0.0
  %1612 = vmatprep.subr.mxu0 0.0
  %1613 = vmatpush1.msra.mxu0 0.0
  %1614 = vmatprep.subr.mxu0 0.0
  %1615 = vmatpush1.msra.mxu0 0.0
  %1616 = vmatprep.subr.mxu0 0.0
  %1617 = vmatpush1.msra.mxu0 0.0
  %1618 = vmatprep.subr.mxu0 0.0
  %1619 = vmatpush1.msra.mxu0 0.0
  %1620 = vmatprep.subr.mxu0 0.0
  %1621 = vmatpush1.msra.mxu0 0.0
  %1622 = vmatprep.subr.mxu0 0.0
  %1623 = vmatpush1.msra.mxu0 0.0
  %1624 = vmatprep.subr.mxu0 0.0
  %1625 = vmatpush1.msra.mxu0 0.0
  %1626 = vmatprep.subr.mxu0 0.0
  %1627 = vmatpush1.msra.mxu0 0.0
  %1628 = vmatprep.subr.mxu0 0.0
  %1629 = vmatpush1.msra.mxu0 0.0
  %1630 = vmatprep.subr.mxu0 0.0
  %1631 = vmatpush1.msra.mxu0 0.0
  %1632 = vmatprep.subr.mxu0 0.0
  %1633 = vmatpush1.msra.mxu0 0.0
  %1634 = vmatprep.subr.mxu0 0.0
  %1635 = vmatpush1.msra.mxu0 0.0
  %1636 = vmatprep.subr.mxu0 0.0
  %1637 = vmatpush1.msra.mxu0 0.0
  %1638 = vmatprep.subr.mxu0 0.0
  %1639 = vmatpush1.msra.mxu0 0.0
  %1640 = vmatprep.subr.mxu0 0.0
  %1641 = vmatpush1.msra.mxu0 0.0
  %1642 = vmatprep.subr.mxu0 0.0
  %1643 = vmatpush1.msra.mxu0 0.0
  %1644 = vmatprep.subr.mxu0 0.0
  %1645 = vmatpush1.msra.mxu0 0.0
  %1646 = vmatprep.subr.mxu0 0.0
  %1647 = vmatpush1.msra.mxu0 0.0
  %1648 = vmatprep.subr.mxu0 0.0
  %1649 = vmatpush1.msra.mxu0 0.0
  %1650 = vmatprep.subr.mxu0 0.0
  %1651 = vmatpush1.msra.mxu0 0.0
  %1652 = vmatprep.subr.mxu0 0.0
  %1653 = vmatpush1.msra.mxu0 0.0
  %1654 = vmatprep.mubr.f32.mxu0 0.0
  %1655 = vmatmul.mubr.f32.gmra.mrb[0].mxu0 %v1588
  %v1656 = vpop.f32.mrb[0].mxu0
  %v1657 = vadd.f32 0.0, %v1656
  %v1658 = vpop.f32.mrb[0].mxu0
  %1659 = vdwg.mxu0
  %1660 = vrot.lane.b32.xlu0 %v375, 48
  %v1661 = vpop.permute.xlu0 %1660
  %v1664 = vsel %vm719, %v1431, 0
  %1666 = vmatprep.subr.mxu0 0.0
  %1667 = vmatpush1.msra.mxu0 %v1661
  %1668 = vmatprep.subr.mxu0 0.0
  %1669 = vmatpush1.msra.mxu0 0.0
  %1670 = vmatprep.subr.mxu0 0.0
  %1671 = vmatpush1.msra.mxu0 0.0
  %1672 = vmatprep.subr.mxu0 0.0
  %1673 = vmatpush1.msra.mxu0 0.0
  %1674 = vmatprep.subr.mxu0 0.0
  %1675 = vmatpush1.msra.mxu0 0.0
  %1676 = vmatprep.subr.mxu0 0.0
  %1677 = vmatpush1.msra.mxu0 0.0
  %1678 = vmatprep.subr.mxu0 0.0
  %1679 = vmatpush1.msra.mxu0 0.0
  %1680 = vmatprep.subr.mxu0 0.0
  %1681 = vmatpush1.msra.mxu0 0.0
  %1682 = vmatprep.subr.mxu0 0.0
  %1683 = vmatpush1.msra.mxu0 0.0
  %1684 = vmatprep.subr.mxu0 0.0
  %1685 = vmatpush1.msra.mxu0 0.0
  %1686 = vmatprep.subr.mxu0 0.0
  %1687 = vmatpush1.msra.mxu0 0.0
  %1688 = vmatprep.subr.mxu0 0.0
  %1689 = vmatpush1.msra.mxu0 0.0
  %1690 = vmatprep.subr.mxu0 0.0
  %1691 = vmatpush1.msra.mxu0 0.0
  %1692 = vmatprep.subr.mxu0 0.0
  %1693 = vmatpush1.msra.mxu0 0.0
  %1694 = vmatprep.subr.mxu0 0.0
  %1695 = vmatpush1.msra.mxu0 0.0
  %1696 = vmatprep.subr.mxu0 0.0
  %1697 = vmatpush1.msra.mxu0 0.0
  %1698 = vmatprep.subr.mxu0 0.0
  %1699 = vmatpush1.msra.mxu0 0.0
  %1700 = vmatprep.subr.mxu0 0.0
  %1701 = vmatpush1.msra.mxu0 0.0
  %1702 = vmatprep.subr.mxu0 0.0
  %1703 = vmatpush1.msra.mxu0 0.0
  %1704 = vmatprep.subr.mxu0 0.0
  %1705 = vmatpush1.msra.mxu0 0.0
  %1706 = vmatprep.subr.mxu0 0.0
  %1707 = vmatpush1.msra.mxu0 0.0
  %1708 = vmatprep.subr.mxu0 0.0
  %1709 = vmatpush1.msra.mxu0 0.0
  %1710 = vmatprep.subr.mxu0 0.0
  %1711 = vmatpush1.msra.mxu0 0.0
  %1712 = vmatprep.subr.mxu0 0.0
  %1713 = vmatpush1.msra.mxu0 0.0
  %1714 = vmatprep.subr.mxu0 0.0
  %1715 = vmatpush1.msra.mxu0 0.0
  %1716 = vmatprep.subr.mxu0 0.0
  %1717 = vmatpush1.msra.mxu0 0.0
  %1718 = vmatprep.subr.mxu0 0.0
  %1719 = vmatpush1.msra.mxu0 0.0
  %1720 = vmatprep.subr.mxu0 0.0
  %1721 = vmatpush1.msra.mxu0 0.0
  %1722 = vmatprep.subr.mxu0 0.0
  %1723 = vmatpush1.msra.mxu0 0.0
  %1724 = vmatprep.subr.mxu0 0.0
  %1725 = vmatpush1.msra.mxu0 0.0
  %1726 = vmatprep.subr.mxu0 0.0
  %1727 = vmatpush1.msra.mxu0 0.0
  %1728 = vmatprep.subr.mxu0 0.0
  %1729 = vmatpush1.msra.mxu0 0.0
  %1730 = vmatprep.mubr.f32.mxu0 0.0
  %1731 = vmatmul.mubr.f32.gmra.mrb[0].mxu0 %v1664
  %v1732 = vpop.f32.mrb[0].mxu0
  %v1733 = vadd.f32 0.0, %v1732
  %v1734 = vpop.f32.mrb[0].mxu0
  %1735 = vdwg.mxu0
  %1738 = vrot.lane.b32.xlu0 %v25, 32
  %v1739 = vpop.permute.xlu0 %1738
  %1740 = vrot.lane.b32.xlu0 %v26, 32
  %v1741 = vpop.permute.xlu0 %1740
  %v1745 = vsel %vm381, %v1505, 0
  %v1748 = vsel %vm381, %v1581, 0
  %v1751 = vsel %vm381, %v1657, 0
  %v1754 = vsel %vm381, %v1733, 0
  %1756 = vmatprep.subr.mxu0 0.0
  %1757 = vmatpush1.msra.mxu0 %v1739
  %1758 = vmatprep.subr.mxu0 0.0
  %1759 = vmatpush1.msra.mxu0 %v1741
  %1760 = vmatprep.subr.mxu0 0.0
  %1761 = vmatpush1.msra.mxu0 0.0
  %1762 = vmatprep.subr.mxu0 0.0
  %1763 = vmatpush1.msra.mxu0 0.0
  %1764 = vmatprep.subr.mxu0 0.0
  %1765 = vmatpush1.msra.mxu0 0.0
  %1766 = vmatprep.subr.mxu0 0.0
  %1767 = vmatpush1.msra.mxu0 0.0
  %1768 = vmatprep.subr.mxu0 0.0
  %1769 = vmatpush1.msra.mxu0 0.0
  %1770 = vmatprep.subr.mxu0 0.0
  %1771 = vmatpush1.msra.mxu0 0.0
  %1772 = vmatprep.subr.mxu0 0.0
  %1773 = vmatpush1.msra.mxu0 0.0
  %1774 = vmatprep.subr.mxu0 0.0
  %1775 = vmatpush1.msra.mxu0 0.0
  %1776 = vmatprep.subr.mxu0 0.0
  %1777 = vmatpush1.msra.mxu0 0.0
  %1778 = vmatprep.subr.mxu0 0.0
  %1779 = vmatpush1.msra.mxu0 0.0
  %1780 = vmatprep.subr.mxu0 0.0
  %1781 = vmatpush1.msra.mxu0 0.0
  %1782 = vmatprep.subr.mxu0 0.0
  %1783 = vmatpush1.msra.mxu0 0.0
  %1784 = vmatprep.subr.mxu0 0.0
  %1785 = vmatpush1.msra.mxu0 0.0
  %1786 = vmatprep.subr.mxu0 0.0
  %1787 = vmatpush1.msra.mxu0 0.0
  %1788 = vmatprep.subr.mxu0 0.0
  %1789 = vmatpush1.msra.mxu0 0.0
  %1790 = vmatprep.subr.mxu0 0.0
  %1791 = vmatpush1.msra.mxu0 0.0
  %1792 = vmatprep.subr.mxu0 0.0
  %1793 = vmatpush1.msra.mxu0 0.0
  %1794 = vmatprep.subr.mxu0 0.0
  %1795 = vmatpush1.msra.mxu0 0.0
  %1796 = vmatprep.subr.mxu0 0.0
  %1797 = vmatpush1.msra.mxu0 0.0
  %1798 = vmatprep.subr.mxu0 0.0
  %1799 = vmatpush1.msra.mxu0 0.0
  %1800 = vmatprep.subr.mxu0 0.0
  %1801 = vmatpush1.msra.mxu0 0.0
  %1802 = vmatprep.subr.mxu0 0.0
  %1803 = vmatpush1.msra.mxu0 0.0
  %1804 = vmatprep.subr.mxu0 0.0
  %1805 = vmatpush1.msra.mxu0 0.0
  %1806 = vmatprep.subr.mxu0 0.0
  %1807 = vmatpush1.msra.mxu0 0.0
  %1808 = vmatprep.subr.mxu0 0.0
  %1809 = vmatpush1.msra.mxu0 0.0
  %1810 = vmatprep.subr.mxu0 0.0
  %1811 = vmatpush1.msra.mxu0 0.0
  %1812 = vmatprep.subr.mxu0 0.0
  %1813 = vmatpush1.msra.mxu0 0.0
  %1814 = vmatprep.subr.mxu0 0.0
  %1815 = vmatpush1.msra.mxu0 0.0
  %1816 = vmatprep.subr.mxu0 0.0
  %1817 = vmatpush1.msra.mxu0 0.0
  %1818 = vmatprep.subr.mxu0 0.0
  %1819 = vmatpush1.msra.mxu0 0.0
  %1820 = vmatprep.mubr.f32.mxu0 0.0
  %1821 = vmatmul.mubr.f32.gmra.mrb[0].mxu0 %v1745
  %v1822 = vpop.f32.mrb[0].mxu0
  %v1823 = vadd.f32 0.0, %v1822
  %v1824 = vpop.f32.mrb[0].mxu0
  %1825 = vmatprep.mubr.f32.mxu0 0.0
  %1826 = vmatmul.mubr.f32.gmra.mrb[0].mxu0 %v1748
  %v1827 = vpop.f32.mrb[0].mxu0
  %v1828 = vadd.f32 0.0, %v1827
  %v1829 = vpop.f32.mrb[0].mxu0
  %1830 = vmatprep.mubr.f32.mxu0 0.0
  %1831 = vmatmul.mubr.f32.gmra.mrb[0].mxu0 %v1751
  %v1832 = vpop.f32.mrb[0].mxu0
  %v1833 = vadd.f32 0.0, %v1832
  %v1834 = vpop.f32.mrb[0].mxu0
  %1835 = vmatprep.mubr.f32.mxu0 0.0
  %1836 = vmatmul.mubr.f32.gmra.mrb[0].mxu0 %v1754
  %v1837 = vpop.f32.mrb[0].mxu0
  %v1838 = vadd.f32 0.0, %v1837
  %v1839 = vpop.f32.mrb[0].mxu0
  %1840 = vdwg.mxu0
  %1843 = vrot.lane.b32.xlu0 %v23, 32
  %v1844 = vpop.permute.xlu0 %1843
  %1845 = vrot.lane.b32.xlu0 %v24, 32
  %v1846 = vpop.permute.xlu0 %1845
  %v1850 = vsel %vm381, %v837, 0
  %v1853 = vsel %vm381, %v913, 0
  %v1856 = vsel %vm381, %v989, 0
  %v1859 = vsel %vm381, %v1065, 0
  %1861 = vmatprep.subr.mxu0 0.0
  %1862 = vmatpush1.msra.mxu0 %v1844
  %1863 = vmatprep.subr.mxu0 0.0
  %1864 = vmatpush1.msra.mxu0 %v1846
  %1865 = vmatprep.subr.mxu0 0.0
  %1866 = vmatpush1.msra.mxu0 0.0
  %1867 = vmatprep.subr.mxu0 0.0
  %1868 = vmatpush1.msra.mxu0 0.0
  %1869 = vmatprep.subr.mxu0 0.0
  %1870 = vmatpush1.msra.mxu0 0.0
  %1871 = vmatprep.subr.mxu0 0.0
  %1872 = vmatpush1.msra.mxu0 0.0
  %1873 = vmatprep.subr.mxu0 0.0
  %1874 = vmatpush1.msra.mxu0 0.0
  %1875 = vmatprep.subr.mxu0 0.0
  %1876 = vmatpush1.msra.mxu0 0.0
  %1877 = vmatprep.subr.mxu0 0.0
  %1878 = vmatpush1.msra.mxu0 0.0
  %1879 = vmatprep.subr.mxu0 0.0
  %1880 = vmatpush1.msra.mxu0 0.0
  %1881 = vmatprep.subr.mxu0 0.0
  %1882 = vmatpush1.msra.mxu0 0.0
  %1883 = vmatprep.subr.mxu0 0.0
  %1884 = vmatpush1.msra.mxu0 0.0
  %1885 = vmatprep.subr.mxu0 0.0
  %1886 = vmatpush1.msra.mxu0 0.0
  %1887 = vmatprep.subr.mxu0 0.0
  %1888 = vmatpush1.msra.mxu0 0.0
  %1889 = vmatprep.subr.mxu0 0.0
  %1890 = vmatpush1.msra.mxu0 0.0
  %1891 = vmatprep.subr.mxu0 0.0
  %1892 = vmatpush1.msra.mxu0 0.0
  %1893 = vmatprep.subr.mxu0 0.0
  %1894 = vmatpush1.msra.mxu0 0.0
  %1895 = vmatprep.subr.mxu0 0.0
  %1896 = vmatpush1.msra.mxu0 0.0
  %1897 = vmatprep.subr.mxu0 0.0
  %1898 = vmatpush1.msra.mxu0 0.0
  %1899 = vmatprep.subr.mxu0 0.0
  %1900 = vmatpush1.msra.mxu0 0.0
  %1901 = vmatprep.subr.mxu0 0.0
  %1902 = vmatpush1.msra.mxu0 0.0
  %1903 = vmatprep.subr.mxu0 0.0
  %1904 = vmatpush1.msra.mxu0 0.0
  %1905 = vmatprep.subr.mxu0 0.0
  %1906 = vmatpush1.msra.mxu0 0.0
  %1907 = vmatprep.subr.mxu0 0.0
  %1908 = vmatpush1.msra.mxu0 0.0
  %1909 = vmatprep.subr.mxu0 0.0
  %1910 = vmatpush1.msra.mxu0 0.0
  %1911 = vmatprep.subr.mxu0 0.0
  %1912 = vmatpush1.msra.mxu0 0.0
  %1913 = vmatprep.subr.mxu0 0.0
  %1914 = vmatpush1.msra.mxu0 0.0
  %1915 = vmatprep.subr.mxu0 0.0
  %1916 = vmatpush1.msra.mxu0 0.0
  %1917 = vmatprep.subr.mxu0 0.0
  %1918 = vmatpush1.msra.mxu0 0.0
  %1919 = vmatprep.subr.mxu0 0.0
  %1920 = vmatpush1.msra.mxu0 0.0
  %1921 = vmatprep.subr.mxu0 0.0
  %1922 = vmatpush1.msra.mxu0 0.0
  %1923 = vmatprep.subr.mxu0 0.0
  %1924 = vmatpush1.msra.mxu0 0.0
  %1925 = vmatprep.mubr.f32.mxu0 0.0
  %1926 = vmatmul.mubr.f32.gmra.mrb[0].mxu0 %v1850
  %v1927 = vpop.f32.mrb[0].mxu0
  %v1928 = vadd.f32 %v1823, %v1927
  %v1929 = vpop.f32.mrb[0].mxu0
  %1930 = vmatprep.mubr.f32.mxu0 0.0
  %1931 = vmatmul.mubr.f32.gmra.mrb[0].mxu0 %v1853
  %v1932 = vpop.f32.mrb[0].mxu0
  %v1933 = vadd.f32 %v1828, %v1932
  %v1934 = vpop.f32.mrb[0].mxu0
  %1935 = vmatprep.mubr.f32.mxu0 0.0
  %1936 = vmatmul.mubr.f32.gmra.mrb[0].mxu0 %v1856
  %v1937 = vpop.f32.mrb[0].mxu0
  %v1938 = vadd.f32 %v1833, %v1937
  %v1939 = vpop.f32.mrb[0].mxu0
  %1940 = vmatprep.mubr.f32.mxu0 0.0
  %1941 = vmatmul.mubr.f32.gmra.mrb[0].mxu0 %v1859
  %v1942 = vpop.f32.mrb[0].mxu0
  %v1943 = vadd.f32 %v1838, %v1942
  %v1944 = vpop.f32.mrb[0].mxu0
  %1945 = vdwg.mxu0
  %v1946 = vlaneseq
  %v1947 = vshrl.u32 %v1946, 7
  %v1948 = vsub.s32 0, %v1947
  %v1949 = vrot.slane %v44, %v1948
  %v1950 = vadd.f32 %v1928, %v1949
  %v1951 = vadd.f32 %v1933, %v1949
  %v1952 = vadd.f32 %v1938, %v1949
  %v1953 = vadd.f32 %v1943, %v1949
  %v1954 = vadd.f32 %v261, %v1950
  %v1955 = vadd.f32 %v262, %v1951
  %v1956 = vadd.f32 %v263, %v1952
  %v1957 = vadd.f32 %v264, %v1953
  %v1958 = vsel %vm195, %v1954, 0.0
  %1959 = vadd.xlane.f32.xlu0 %v1958
  %v1960 = vpop.xlane.xlu0 %1959
  %v1961 = vsel %vm195, %v1955, 0.0
  %1962 = vadd.xlane.f32.xlu0 %v1961
  %v1963 = vpop.xlane.xlu0 %1962
  %v1964 = vsel %vm195, %v1956, 0.0
  %1965 = vadd.xlane.f32.xlu0 %v1964
  %v1966 = vpop.xlane.xlu0 %1965
  %v1967 = vsel %vm195, %v1957, 0.0
  %1968 = vadd.xlane.f32.xlu0 %v1967
  %v1969 = vpop.xlane.xlu0 %1968
  %v1970 = vmul.f32 %v1960, %v208
  %v1971 = vmul.f32 %v1963, %v208
  %v1972 = vmul.f32 %v1966, %v208
  %v1973 = vmul.f32 %v1969, %v208
  %v1974 = vsub.f32 %v1954, %v1970
  %v1975 = vsub.f32 %v1955, %v1971
  %v1976 = vsub.f32 %v1956, %v1972
  %v1977 = vsub.f32 %v1957, %v1973
  %v1978 = vmul.f32 %v1974, %v1974
  %v1979 = vmul.f32 %v1975, %v1975
  %v1980 = vmul.f32 %v1976, %v1976
  %v1981 = vmul.f32 %v1977, %v1977
  %v1982 = vsel %vm195, %v1978, 0.0
  %1983 = vadd.xlane.f32.xlu0 %v1982
  %v1984 = vpop.xlane.xlu0 %1983
  %v1985 = vsel %vm195, %v1979, 0.0
  %1986 = vadd.xlane.f32.xlu0 %v1985
  %v1987 = vpop.xlane.xlu0 %1986
  %v1988 = vsel %vm195, %v1980, 0.0
  %1989 = vadd.xlane.f32.xlu0 %v1988
  %v1990 = vpop.xlane.xlu0 %1989
  %v1991 = vsel %vm195, %v1981, 0.0
  %1992 = vadd.xlane.f32.xlu0 %v1991
  %v1993 = vpop.xlane.xlu0 %1992
  %v1994 = vmul.f32 %v1984, %v208
  %v1995 = vmul.f32 %v1987, %v208
  %v1996 = vmul.f32 %v1990, %v208
  %v1997 = vmul.f32 %v1993, %v208
  %v1998 = vadd.f32 %v1994, 1e-12
  %v1999 = vadd.f32 %v1995, 1e-12
  %v2000 = vadd.f32 %v1996, 1e-12
  %v2001 = vadd.f32 %v1997, 1e-12
  %v2002 = vrsqrt.pop %v1998
  %v2003 = vrsqrt.pop %v1999
  %v2004 = vrsqrt.pop %v2000
  %v2005 = vrsqrt.pop %v2001
  %v2006 = vmul.f32 %v1974, %v2002
  %v2007 = vmul.f32 %v1975, %v2003
  %v2008 = vmul.f32 %v1976, %v2004
  %v2009 = vmul.f32 %v1977, %v2005
  %v2010 = vlaneseq
  %v2011 = vshrl.u32 %v2010, 7
  %v2012 = vsub.s32 0, %v2011
  %v2013 = vrot.slane %v45, %v2012
  %v2014 = vmul.f32 %v2006, %v2013
  %v2015 = vmul.f32 %v2007, %v2013
  %v2016 = vmul.f32 %v2008, %v2013
  %v2017 = vmul.f32 %v2009, %v2013
  %v2018 = vlaneseq
  %v2019 = vshrl.u32 %v2018, 7
  %v2020 = vsub.s32 0, %v2019
  %v2021 = vrot.slane %v46, %v2020
  %v2022 = vadd.f32 %v2014, %v2021
  %v2023 = vadd.f32 %v2015, %v2021
  %v2024 = vadd.f32 %v2016, %v2021
  %v2025 = vadd.f32 %v2017, %v2021
  %v2026 = vlaneseq
  %v2027 = vshrl.u32 %v2026, 7
  %v2028 = vsub.s32 0, %v2027
  %v2029 = vrot.slane %v47, %v2028
  %v2031 = vsel %vm195, %v2022, 0
  %v2034 = vsel %vm195, %v2023, 0
  %v2037 = vsel %vm195, %v2024, 0
  %v2040 = vsel %vm195, %v2025, 0
  %2042 = vmatprep.subr.mxu0 0.0
  %2043 = vmatpush1.msra.mxu0 %v27
  %2044 = vmatprep.subr.mxu0 0.0
  %2045 = vmatpush1.msra.mxu0 %v28
  %2046 = vmatprep.subr.mxu0 0.0
  %2047 = vmatpush1.msra.mxu0 %v29
  %2048 = vmatprep.subr.mxu0 0.0
  %2049 = vmatpush1.msra.mxu0 %v30
  %2050 = vmatprep.subr.mxu0 0.0
  %2051 = vmatpush1.msra.mxu0 0.0
  %2052 = vmatprep.subr.mxu0 0.0
  %2053 = vmatpush1.msra.mxu0 0.0
  %2054 = vmatprep.subr.mxu0 0.0
  %2055 = vmatpush1.msra.mxu0 0.0
  %2056 = vmatprep.subr.mxu0 0.0
  %2057 = vmatpush1.msra.mxu0 0.0
  %2058 = vmatprep.subr.mxu0 0.0
  %2059 = vmatpush1.msra.mxu0 0.0
  %2060 = vmatprep.subr.mxu0 0.0
  %2061 = vmatpush1.msra.mxu0 0.0
  %2062 = vmatprep.subr.mxu0 0.0
  %2063 = vmatpush1.msra.mxu0 0.0
  %2064 = vmatprep.subr.mxu0 0.0
  %2065 = vmatpush1.msra.mxu0 0.0
  %2066 = vmatprep.subr.mxu0 0.0
  %2067 = vmatpush1.msra.mxu0 0.0
  %2068 = vmatprep.subr.mxu0 0.0
  %2069 = vmatpush1.msra.mxu0 0.0
  %2070 = vmatprep.subr.mxu0 0.0
  %2071 = vmatpush1.msra.mxu0 0.0
  %2072 = vmatprep.subr.mxu0 0.0
  %2073 = vmatpush1.msra.mxu0 0.0
  %2074 = vmatprep.subr.mxu0 0.0
  %2075 = vmatpush1.msra.mxu0 0.0
  %2076 = vmatprep.subr.mxu0 0.0
  %2077 = vmatpush1.msra.mxu0 0.0
  %2078 = vmatprep.subr.mxu0 0.0
  %2079 = vmatpush1.msra.mxu0 0.0
  %2080 = vmatprep.subr.mxu0 0.0
  %2081 = vmatpush1.msra.mxu0 0.0
  %2082 = vmatprep.subr.mxu0 0.0
  %2083 = vmatpush1.msra.mxu0 0.0
  %2084 = vmatprep.subr.mxu0 0.0
  %2085 = vmatpush1.msra.mxu0 0.0
  %2086 = vmatprep.subr.mxu0 0.0
  %2087 = vmatpush1.msra.mxu0 0.0
  %2088 = vmatprep.subr.mxu0 0.0
  %2089 = vmatpush1.msra.mxu0 0.0
  %2090 = vmatprep.subr.mxu0 0.0
  %2091 = vmatpush1.msra.mxu0 0.0
  %2092 = vmatprep.subr.mxu0 0.0
  %2093 = vmatpush1.msra.mxu0 0.0
  %2094 = vmatprep.subr.mxu0 0.0
  %2095 = vmatpush1.msra.mxu0 0.0
  %2096 = vmatprep.subr.mxu0 0.0
  %2097 = vmatpush1.msra.mxu0 0.0
  %2098 = vmatprep.subr.mxu0 0.0
  %2099 = vmatpush1.msra.mxu0 0.0
  %2100 = vmatprep.subr.mxu0 0.0
  %2101 = vmatpush1.msra.mxu0 0.0
  %2102 = vmatprep.subr.mxu0 0.0
  %2103 = vmatpush1.msra.mxu0 0.0
  %2104 = vmatprep.subr.mxu0 0.0
  %2105 = vmatpush1.msra.mxu0 0.0
  %2106 = vmatprep.mubr.f32.mxu0 0.0
  %2107 = vmatmul.mubr.f32.gmra.mrb[0].mxu0 %v2031
  %v2108 = vpop.f32.mrb[0].mxu0
  %v2109 = vadd.f32 %v2029, %v2108
  %v2110 = vpop.f32.mrb[0].mxu0
  %2111 = vmatprep.mubr.f32.mxu0 0.0
  %2112 = vmatmul.mubr.f32.gmra.mrb[0].mxu0 %v2034
  %v2113 = vpop.f32.mrb[0].mxu0
  %v2114 = vadd.f32 %v2029, %v2113
  %v2115 = vpop.f32.mrb[0].mxu0
  %2116 = vmatprep.mubr.f32.mxu0 0.0
  %2117 = vmatmul.mubr.f32.gmra.mrb[0].mxu0 %v2037
  %v2118 = vpop.f32.mrb[0].mxu0
  %v2119 = vadd.f32 %v2029, %v2118
  %v2120 = vpop.f32.mrb[0].mxu0
  %2121 = vmatprep.mubr.f32.mxu0 0.0
  %2122 = vmatmul.mubr.f32.gmra.mrb[0].mxu0 %v2040
  %v2123 = vpop.f32.mrb[0].mxu0
  %v2124 = vadd.f32 %v2029, %v2123
  %v2125 = vpop.f32.mrb[0].mxu0
  %2126 = vdwg.mxu0
  %v2127 = vmul.f32 %v2109, %v2109
  %v2128 = vmul.f32 %v2114, %v2114
  %v2129 = vmul.f32 %v2119, %v2119
  %v2130 = vmul.f32 %v2124, %v2124
  %v2131 = vmul.f32 %v2109, %v2127
  %v2132 = vmul.f32 %v2114, %v2128
  %v2133 = vmul.f32 %v2119, %v2129
  %v2134 = vmul.f32 %v2124, %v2130
  %v2135 = vmul.f32 %v2131, 0.044715
  %v2136 = vmul.f32 %v2132, 0.044715
  %v2137 = vmul.f32 %v2133, 0.044715
  %v2138 = vmul.f32 %v2134, 0.044715
  %v2139 = vadd.f32 %v2109, %v2135
  %v2140 = vadd.f32 %v2114, %v2136
  %v2141 = vadd.f32 %v2119, %v2137
  %v2142 = vadd.f32 %v2124, %v2138
  %v2143 = vmul.f32 %v2139, 0.7978846
  %v2144 = vmul.f32 %v2140, 0.7978846
  %v2145 = vmul.f32 %v2141, 0.7978846
  %v2146 = vmul.f32 %v2142, 0.7978846
  %v2147 = vtanh.pop %v2143
  %v2148 = vtanh.pop %v2144
  %v2149 = vtanh.pop %v2145
  %v2150 = vtanh.pop %v2146
  %v2151 = vadd.f32 %v2147, 1.0
  %v2152 = vadd.f32 %v2148, 1.0
  %v2153 = vadd.f32 %v2149, 1.0
  %v2154 = vadd.f32 %v2150, 1.0
  %v2155 = vmul.f32 %v2151, 0.5
  %v2156 = vmul.f32 %v2152, 0.5
  %v2157 = vmul.f32 %v2153, 0.5
  %v2158 = vmul.f32 %v2154, 0.5
  %v2159 = vmul.f32 %v2109, %v2155
  %v2160 = vmul.f32 %v2114, %v2156
  %v2161 = vmul.f32 %v2119, %v2157
  %v2162 = vmul.f32 %v2124, %v2158
  %v2163 = vlaneseq
  %v2164 = vshrl.u32 %v2163, 7
  %v2165 = vsub.s32 0, %v2164
  %v2166 = vrot.slane %v48, %v2165
  %vm2167 = vcmask 523264
  %v2169 = vsel %vm2167, %v2159, 0
  %v2172 = vsel %vm2167, %v2160, 0
  %v2175 = vsel %vm2167, %v2161, 0
  %v2178 = vsel %vm2167, %v2162, 0
  %2180 = vmatprep.subr.mxu0 0.0
  %2181 = vmatpush1.msra.mxu0 %v31
  %2182 = vmatprep.subr.mxu0 0.0
  %2183 = vmatpush1.msra.mxu0 %v32
  %2184 = vmatprep.subr.mxu0 0.0
  %2185 = vmatpush1.msra.mxu0 %v33
  %2186 = vmatprep.subr.mxu0 0.0
  %2187 = vmatpush1.msra.mxu0 %v34
  %2188 = vmatprep.subr.mxu0 0.0
  %2189 = vmatpush1.msra.mxu0 %v35
  %2190 = vmatprep.subr.mxu0 0.0
  %2191 = vmatpush1.msra.mxu0 %v36
  %2192 = vmatprep.subr.mxu0 0.0
  %2193 = vmatpush1.msra.mxu0 %v37
  %2194 = vmatprep.subr.mxu0 0.0
  %2195 = vmatpush1.msra.mxu0 %v38
  %2196 = vmatprep.subr.mxu0 0.0
  %2197 = vmatpush1.msra.mxu0 0.0
  %2198 = vmatprep.subr.mxu0 0.0
  %2199 = vmatpush1.msra.mxu0 0.0
  %2200 = vmatprep.subr.mxu0 0.0
  %2201 = vmatpush1.msra.mxu0 0.0
  %2202 = vmatprep.subr.mxu0 0.0
  %2203 = vmatpush1.msra.mxu0 0.0
  %2204 = vmatprep.subr.mxu0 0.0
  %2205 = vmatpush1.msra.mxu0 0.0
  %2206 = vmatprep.subr.mxu0 0.0
  %2207 = vmatpush1.msra.mxu0 0.0
  %2208 = vmatprep.subr.mxu0 0.0
  %2209 = vmatpush1.msra.mxu0 0.0
  %2210 = vmatprep.subr.mxu0 0.0
  %2211 = vmatpush1.msra.mxu0 0.0
  %2212 = vmatprep.subr.mxu0 0.0
  %2213 = vmatpush1.msra.mxu0 0.0
  %2214 = vmatprep.subr.mxu0 0.0
  %2215 = vmatpush1.msra.mxu0 0.0
  %2216 = vmatprep.subr.mxu0 0.0
  %2217 = vmatpush1.msra.mxu0 0.0
  %2218 = vmatprep.subr.mxu0 0.0
  %2219 = vmatpush1.msra.mxu0 0.0
  %2220 = vmatprep.subr.mxu0 0.0
  %2221 = vmatpush1.msra.mxu0 0.0
  %2222 = vmatprep.subr.mxu0 0.0
  %2223 = vmatpush1.msra.mxu0 0.0
  %2224 = vmatprep.subr.mxu0 0.0
  %2225 = vmatpush1.msra.mxu0 0.0
  %2226 = vmatprep.subr.mxu0 0.0
  %2227 = vmatpush1.msra.mxu0 0.0
  %2228 = vmatprep.subr.mxu0 0.0
  %2229 = vmatpush1.msra.mxu0 0.0
  %2230 = vmatprep.subr.mxu0 0.0
  %2231 = vmatpush1.msra.mxu0 0.0
  %2232 = vmatprep.subr.mxu0 0.0
  %2233 = vmatpush1.msra.mxu0 0.0
  %2234 = vmatprep.subr.mxu0 0.0
  %2235 = vmatpush1.msra.mxu0 0.0
  %2236 = vmatprep.subr.mxu0 0.0
  %2237 = vmatpush1.msra.mxu0 0.0
  %2238 = vmatprep.subr.mxu0 0.0
  %2239 = vmatpush1.msra.mxu0 0.0
  %2240 = vmatprep.subr.mxu0 0.0
  %2241 = vmatpush1.msra.mxu0 0.0
  %2242 = vmatprep.subr.mxu0 0.0
  %2243 = vmatpush1.msra.mxu0 0.0
  %2244 = vmatprep.mubr.f32.mxu0 0.0
  %2245 = vmatmul.mubr.f32.gmra.mrb[0].mxu0 %v2169
  %v2246 = vpop.f32.mrb[0].mxu0
  %v2247 = vadd.f32 %v2166, %v2246
  %v2248 = vpop.f32.mrb[0].mxu0
  %2249 = vmatprep.mubr.f32.mxu0 0.0
  %2250 = vmatmul.mubr.f32.gmra.mrb[0].mxu0 %v2172
  %v2251 = vpop.f32.mrb[0].mxu0
  %v2252 = vadd.f32 %v2166, %v2251
  %v2253 = vpop.f32.mrb[0].mxu0
  %2254 = vmatprep.mubr.f32.mxu0 0.0
  %2255 = vmatmul.mubr.f32.gmra.mrb[0].mxu0 %v2175
  %v2256 = vpop.f32.mrb[0].mxu0
  %v2257 = vadd.f32 %v2166, %v2256
  %v2258 = vpop.f32.mrb[0].mxu0
  %2259 = vmatprep.mubr.f32.mxu0 0.0
  %2260 = vmatmul.mubr.f32.gmra.mrb[0].mxu0 %v2178
  %v2261 = vpop.f32.mrb[0].mxu0
  %v2262 = vadd.f32 %v2166, %v2261
  %v2263 = vpop.f32.mrb[0].mxu0
  %2264 = vdwg.mxu0
  %v2265 = vadd.f32 %v2022, %v2247
  %v2266 = vadd.f32 %v2023, %v2252
  %v2267 = vadd.f32 %v2024, %v2257
  %v2268 = vadd.f32 %v2025, %v2262
  %v2269 = vsel %vm195, %v2265, 0.0
  %2270 = vadd.xlane.f32.xlu0 %v2269
  %v2271 = vpop.xlane.xlu0 %2270
  %v2272 = vsel %vm195, %v2266, 0.0
  %2273 = vadd.xlane.f32.xlu0 %v2272
  %v2274 = vpop.xlane.xlu0 %2273
  %v2275 = vsel %vm195, %v2267, 0.0
  %2276 = vadd.xlane.f32.xlu0 %v2275
  %v2277 = vpop.xlane.xlu0 %2276
  %v2278 = vsel %vm195, %v2268, 0.0
  %2279 = vadd.xlane.f32.xlu0 %v2278
  %v2280 = vpop.xlane.xlu0 %2279
  %v2281 = vmul.f32 %v2271, %v208
  %v2282 = vmul.f32 %v2274, %v208
  %v2283 = vmul.f32 %v2277, %v208
  %v2284 = vmul.f32 %v2280, %v208
  %v2285 = vsub.f32 %v2265, %v2281
  %v2286 = vsub.f32 %v2266, %v2282
  %v2287 = vsub.f32 %v2267, %v2283
  %v2288 = vsub.f32 %v2268, %v2284
  %v2289 = vmul.f32 %v2285, %v2285
  %v2290 = vmul.f32 %v2286, %v2286
  %v2291 = vmul.f32 %v2287, %v2287
  %v2292 = vmul.f32 %v2288, %v2288
  %v2293 = vsel %vm195, %v2289, 0.0
  %2294 = vadd.xlane.f32.xlu0 %v2293
  %v2295 = vpop.xlane.xlu0 %2294
  %v2296 = vsel %vm195, %v2290, 0.0
  %2297 = vadd.xlane.f32.xlu0 %v2296
  %v2298 = vpop.xlane.xlu0 %2297
  %v2299 = vsel %vm195, %v2291, 0.0
  %2300 = vadd.xlane.f32.xlu0 %v2299
  %v2301 = vpop.xlane.xlu0 %2300
  %v2302 = vsel %vm195, %v2292, 0.0
  %2303 = vadd.xlane.f32.xlu0 %v2302
  %v2304 = vpop.xlane.xlu0 %2303
  %v2305 = vmul.f32 %v2295, %v208
  %v2306 = vmul.f32 %v2298, %v208
  %v2307 = vmul.f32 %v2301, %v208
  %v2308 = vmul.f32 %v2304, %v208
  %v2309 = vadd.f32 %v2305, 1e-12
  %v2310 = vadd.f32 %v2306, 1e-12
  %v2311 = vadd.f32 %v2307, 1e-12
  %v2312 = vadd.f32 %v2308, 1e-12
  %v2313 = vrsqrt.pop %v2309
  %v2314 = vrsqrt.pop %v2310
  %v2315 = vrsqrt.pop %v2311
  %v2316 = vrsqrt.pop %v2312
  %v2317 = vmul.f32 %v2285, %v2313
  %v2318 = vmul.f32 %v2286, %v2314
  %v2319 = vmul.f32 %v2287, %v2315
  %v2320 = vmul.f32 %v2288, %v2316
  %v2321 = vlaneseq
  %v2322 = vshrl.u32 %v2321, 7
  %v2323 = vsub.s32 0, %v2322
  %v2324 = vrot.slane %v49, %v2323
  %v2325 = vmul.f32 %v2317, %v2324
  %v2326 = vmul.f32 %v2318, %v2324
  %v2327 = vmul.f32 %v2319, %v2324
  %v2328 = vmul.f32 %v2320, %v2324
  %v2329 = vlaneseq
  %v2330 = vshrl.u32 %v2329, 7
  %v2331 = vsub.s32 0, %v2330
  %v2332 = vrot.slane %v50, %v2331
  %v2333 = vadd.f32 %v2325, %v2332
  %v2334 = vadd.f32 %v2326, %v2332
  %v2335 = vadd.f32 %v2327, %v2332
  %v2336 = vadd.f32 %v2328, %v2332
  %v2337 = vlaneseq
  %v2338 = vshrl.u32 %v2337, 7
  %v2339 = vmul.u32 %v2338, 8
  %vm2340 = vcmp.eq.s32.totalorder %v53, %v2339
  %v2341 = vsel %vm2340, 1, 0
  %v2342 = vcvt.s32.f32 %v2341
  %v2344 = vsel %vm195, %v2342, 0
  %2346 = vmatprep.subr.mxu0 0.0
  %2347 = vmatpush1.msra.mxu0 %v2333
  %2348 = vmatprep.subr.mxu0 0.0
  %2349 = vmatpush1.msra.mxu0 %v2334
  %2350 = vmatprep.subr.mxu0 0.0
  %2351 = vmatpush1.msra.mxu0 %v2335
  %2352 = vmatprep.subr.mxu0 0.0
  %2353 = vmatpush1.msra.mxu0 %v2336
  %2354 = vmatprep.subr.mxu0 0.0
  %2355 = vmatpush1.msra.mxu0 0.0
  %2356 = vmatprep.subr.mxu0 0.0
  %2357 = vmatpush1.msra.mxu0 0.0
  %2358 = vmatprep.subr.mxu0 0.0
  %2359 = vmatpush1.msra.mxu0 0.0
  %2360 = vmatprep.subr.mxu0 0.0
  %2361 = vmatpush1.msra.mxu0 0.0
  %2362 = vmatprep.subr.mxu0 0.0
  %2363 = vmatpush1.msra.mxu0 0.0
  %2364 = vmatprep.subr.mxu0 0.0
  %2365 = vmatpush1.msra.mxu0 0.0
  %2366 = vmatprep.subr.mxu0 0.0
  %2367 = vmatpush1.msra.mxu0 0.0
  %2368 = vmatprep.subr.mxu0 0.0
  %2369 = vmatpush1.msra.mxu0 0.0
  %2370 = vmatprep.subr.mxu0 0.0
  %2371 = vmatpush1.msra.mxu0 0.0
  %2372 = vmatprep.subr.mxu0 0.0
  %2373 = vmatpush1.msra.mxu0 0.0
  %2374 = vmatprep.subr.mxu0 0.0
  %2375 = vmatpush1.msra.mxu0 0.0
  %2376 = vmatprep.subr.mxu0 0.0
  %2377 = vmatpush1.msra.mxu0 0.0
  %2378 = vmatprep.subr.mxu0 0.0
  %2379 = vmatpush1.msra.mxu0 0.0
  %2380 = vmatprep.subr.mxu0 0.0
  %2381 = vmatpush1.msra.mxu0 0.0
  %2382 = vmatprep.subr.mxu0 0.0
  %2383 = vmatpush1.msra.mxu0 0.0
  %2384 = vmatprep.subr.mxu0 0.0
  %2385 = vmatpush1.msra.mxu0 0.0
  %2386 = vmatprep.subr.mxu0 0.0
  %2387 = vmatpush1.msra.mxu0 0.0
  %2388 = vmatprep.subr.mxu0 0.0
  %2389 = vmatpush1.msra.mxu0 0.0
  %2390 = vmatprep.subr.mxu0 0.0
  %2391 = vmatpush1.msra.mxu0 0.0
  %2392 = vmatprep.subr.mxu0 0.0
  %2393 = vmatpush1.msra.mxu0 0.0
  %2394 = vmatprep.subr.mxu0 0.0
  %2395 = vmatpush1.msra.mxu0 0.0
  %2396 = vmatprep.subr.mxu0 0.0
  %2397 = vmatpush1.msra.mxu0 0.0
  %2398 = vmatprep.subr.mxu0 0.0
  %2399 = vmatpush1.msra.mxu0 0.0
  %2400 = vmatprep.subr.mxu0 0.0
  %2401 = vmatpush1.msra.mxu0 0.0
  %2402 = vmatprep.subr.mxu0 0.0
  %2403 = vmatpush1.msra.mxu0 0.0
  %2404 = vmatprep.subr.mxu0 0.0
  %2405 = vmatpush1.msra.mxu0 0.0
  %2406 = vmatprep.subr.mxu0 0.0
  %2407 = vmatpush1.msra.mxu0 0.0
  %2408 = vmatprep.subr.mxu0 0.0
  %2409 = vmatpush1.msra.mxu0 0.0
  %2410 = vmatprep.mubr.f32.mxu0 0.0
  %2411 = vmatmul.mubr.f32.gmra.mrb[0].mxu0 %v2344
  %v2412 = vpop.f32.mrb[0].mxu0
  %v2413 = vadd.f32 0.0, %v2412
  %v2414 = vpop.f32.mrb[0].mxu0
  %2415 = vdwg.mxu0
  %v2416 = vlaneseq
  %v2417 = vshrl.u32 %v2416, 7
  %v2418 = vsub.s32 0, %v2417
  %v2419 = vrot.slane %v51, %v2418
  %2424 = vrot.lane.b32.xlu0 %v27, 64
  %v2425 = vpop.permute.xlu0 %2424
  %2426 = vrot.lane.b32.xlu0 %v28, 64
  %v2427 = vpop.permute.xlu0 %2426
  %2428 = vrot.lane.b32.xlu0 %v29, 64
  %v2429 = vpop.permute.xlu0 %2428
  %2430 = vrot.lane.b32.xlu0 %v30, 64
  %v2431 = vpop.permute.xlu0 %2430
  %v2437 = vsel %vm195, %v2413, 0
  %2439 = vmatprep.subr.mxu0 0.0
  %2440 = vmatpush1.msra.mxu0 %v2425
  %2441 = vmatprep.subr.mxu0 0.0
  %2442 = vmatpush1.msra.mxu0 %v2427
  %2443 = vmatprep.subr.mxu0 0.0
  %2444 = vmatpush1.msra.mxu0 %v2429
  %2445 = vmatprep.subr.mxu0 0.0
  %2446 = vmatpush1.msra.mxu0 %v2431
  %2447 = vmatprep.subr.mxu0 0.0
  %2448 = vmatpush1.msra.mxu0 0.0
  %2449 = vmatprep.subr.mxu0 0.0
  %2450 = vmatpush1.msra.mxu0 0.0
  %2451 = vmatprep.subr.mxu0 0.0
  %2452 = vmatpush1.msra.mxu0 0.0
  %2453 = vmatprep.subr.mxu0 0.0
  %2454 = vmatpush1.msra.mxu0 0.0
  %2455 = vmatprep.subr.mxu0 0.0
  %2456 = vmatpush1.msra.mxu0 0.0
  %2457 = vmatprep.subr.mxu0 0.0
  %2458 = vmatpush1.msra.mxu0 0.0
  %2459 = vmatprep.subr.mxu0 0.0
  %2460 = vmatpush1.msra.mxu0 0.0
  %2461 = vmatprep.subr.mxu0 0.0
  %2462 = vmatpush1.msra.mxu0 0.0
  %2463 = vmatprep.subr.mxu0 0.0
  %2464 = vmatpush1.msra.mxu0 0.0
  %2465 = vmatprep.subr.mxu0 0.0
  %2466 = vmatpush1.msra.mxu0 0.0
  %2467 = vmatprep.subr.mxu0 0.0
  %2468 = vmatpush1.msra.mxu0 0.0
  %2469 = vmatprep.subr.mxu0 0.0
  %2470 = vmatpush1.msra.mxu0 0.0
  %2471 = vmatprep.subr.mxu0 0.0
  %2472 = vmatpush1.msra.mxu0 0.0
  %2473 = vmatprep.subr.mxu0 0.0
  %2474 = vmatpush1.msra.mxu0 0.0
  %2475 = vmatprep.subr.mxu0 0.0
  %2476 = vmatpush1.msra.mxu0 0.0
  %2477 = vmatprep.subr.mxu0 0.0
  %2478 = vmatpush1.msra.mxu0 0.0
  %2479 = vmatprep.subr.mxu0 0.0
  %2480 = vmatpush1.msra.mxu0 0.0
  %2481 = vmatprep.subr.mxu0 0.0
  %2482 = vmatpush1.msra.mxu0 0.0
  %2483 = vmatprep.subr.mxu0 0.0
  %2484 = vmatpush1.msra.mxu0 0.0
  %2485 = vmatprep.subr.mxu0 0.0
  %2486 = vmatpush1.msra.mxu0 0.0
  %2487 = vmatprep.subr.mxu0 0.0
  %2488 = vmatpush1.msra.mxu0 0.0
  %2489 = vmatprep.subr.mxu0 0.0
  %2490 = vmatpush1.msra.mxu0 0.0
  %2491 = vmatprep.subr.mxu0 0.0
  %2492 = vmatpush1.msra.mxu0 0.0
  %2493 = vmatprep.subr.mxu0 0.0
  %2494 = vmatpush1.msra.mxu0 0.0
  %2495 = vmatprep.subr.mxu0 0.0
  %2496 = vmatpush1.msra.mxu0 0.0
  %2497 = vmatprep.subr.mxu0 0.0
  %2498 = vmatpush1.msra.mxu0 0.0
  %2499 = vmatprep.subr.mxu0 0.0
  %2500 = vmatpush1.msra.mxu0 0.0
  %2501 = vmatprep.subr.mxu0 0.0
  %2502 = vmatpush1.msra.mxu0 0.0
  %2503 = vmatprep.mubr.f32.mxu0 0.0
  %2504 = vmatmul.mubr.f32.gmra.mrb[0].mxu0 %v2437
  %v2505 = vpop.f32.mrb[0].mxu0
  %v2506 = vadd.f32 %v2419, %v2505
  %v2507 = vpop.f32.mrb[0].mxu0
  %2508 = vdwg.mxu0
  %v2509 = vtanh.pop %v2506
  %v2511 = vrot.slane %v2509, 2
  %v2513 = vmul.f32 %v2509, %v2511
  %vm2514 = vcmask 254976
  %v2515 = vsel %vm2514, %v2513, 0.0
  %2516 = vadd.xlane.f32.xlu0 %v2515
  %v2517 = vpop.xlane.xlu0 %2516
  %v2518 = vmul.f32 %v2509, %v2509
  %v2519 = vsel %vm2514, %v2518, 0.0
  %2520 = vadd.xlane.f32.xlu0 %v2519
  %v2521 = vpop.xlane.xlu0 %2520
  %v2522 = vrsqrt.pop %v2521
  %v2523 = vmul.f32 %v2521, %v2522
  %vm2524 = vcmp.eq.f32.partialorder %v2521, inf
  %v2525 = vsel %vm2524, %v2521, %v2523
  %vm2526 = vcmp.eq.f32.partialorder %v2521, 0.0
  %v2527 = vand.u32 %v2521, 2147483648
  %v2528 = vsel %vm2526, %v2527, %v2525
  %vm2529 = vcmask 257026
  %v2530 = vsel %vm2529, %v2518, 0.0
  %2531 = vadd.xlane.f32.xlu0 %v2530
  %v2532 = vpop.xlane.xlu0 %2531
  %v2533 = vrsqrt.pop %v2532
  %v2534 = vmul.f32 %v2532, %v2533
  %vm2535 = vcmp.eq.f32.partialorder %v2532, inf
  %v2536 = vsel %vm2535, %v2532, %v2534
  %vm2537 = vcmp.eq.f32.partialorder %v2532, 0.0
  %v2538 = vand.u32 %v2532, 2147483648
  %v2539 = vsel %vm2537, %v2538, %v2536
  %v2540 = vmax.f32 %v2528, 1e-08
  %v2541 = vmax.f32 %v2539, 1e-08
  %v2543 = vrot.slane %v2541, 2
  %v2545 = vmul.f32 %v2540, %v2543
  %v2546 = vrcp.pop %v2545
  %v2547 = vmul.f32 %v2517, %v2546
  %2549 = vset.pattern.permute.xlu0 0
  %2550 = vperm.xlu0 %2549, %v2547
  %v2551 = vpop.permute.xlu0 %2550
  %2553 = vst [vmem:[%s6] sm:$0x3] %v2551
  // Predicated region
  $region26: #{bert_similarity_forward.1} parent=0 // pred_check
    _
  $region27: #{bert_similarity_forward.1} parent=0 // pred_check_branch
    %2555 = sbr.rel (0) target = $region29
  $region28: #{bert_similarity_forward.1} parent=0 // pred_region
    _
  $region29: #{bert_similarity_forward.1} parent=0 // pred_fallthru
    _
  // Predicated region
  $region30: #{bert_similarity_forward.1} parent=0 // pred_check
    _
  $region31: #{bert_similarity_forward.1} parent=0 // pred_check_branch
    %2557 = sbr.rel (0) target = $region33
  $region32: #{bert_similarity_forward.1} parent=0 // pred_region
    _
  $region33: #{bert_similarity_forward.1} parent=0 // pred_fallthru
    _

</llo_original>
